<compile_context>
chip_gen: v7x
topology: tpu7x:2x2x1
jax: 0.10.0
libtpu: 0.0.40
codegen_flags: <defaults>
</compile_context>

<pallas_src>
import functools
import math

import jax
import jax.numpy as jnp
from jax.experimental import pallas as pl
from jax.experimental.pallas import tpu as pltpu

NEG_INF = -1e30  # stands in for -inf in boolean attention masks (True -> ignore)


# ----------------------------------------------------------------------------
# In-kernel helpers (operate on VMEM-resident arrays, traced inside the kernels)
# ----------------------------------------------------------------------------

def _ln(x, g, b, eps):
    """LayerNorm over the last dim. x: [S, D]; g, b: [1, D]."""
    mean = jnp.mean(x, axis=-1, keepdims=True)
    xc = x - mean
    var = jnp.mean(xc * xc, axis=-1, keepdims=True)
    return xc * jax.lax.rsqrt(var + eps) * g + b


def _mha(q, k, v, wo, bo, add_mask, num_heads):
    """Multi-head attention + output projection; all intermediates stay in VMEM.

    q: [Sq, D], k/v: [Sk, D], wo: [D, D], bo: [1, D], add_mask: [Sq, Sk] or None.
    concat(heads) @ Wo is computed as  sum_h  o_h @ Wo[h*dh:(h+1)*dh, :]  to avoid
    an in-kernel concatenate and keep the output lane-dense.
    """
    d = q.shape[-1]
    dh = d // num_heads
    scale = 1.0 / math.sqrt(dh)
    out = None
    for h in range(num_heads):
        lo, hi = h * dh, (h + 1) * dh
        qh, kh, vh = q[:, lo:hi], k[:, lo:hi], v[:, lo:hi]
        s = jax.lax.dot_general(qh, kh, (((1,), (1,)), ((), ())),
                                preferred_element_type=jnp.float32) * scale
        if add_mask is not None:
            s = s + add_mask
        s_max = jnp.max(s, axis=-1, keepdims=True)
        p = jnp.exp(s - s_max)
        p = p * pl.reciprocal(jnp.sum(p, axis=-1, keepdims=True), approx=True)
        oh = jnp.dot(p, vh, preferred_element_type=jnp.float32)
        contrib = jnp.dot(oh, wo[lo:hi, :], preferred_element_type=jnp.float32)
        out = contrib if out is None else out + contrib
    return out + bo


# ----------------------------------------------------------------------------
# Pallas kernels (one fused kernel per transformer layer / head)
# ----------------------------------------------------------------------------

def _encoder_layer_kernel(x_ref, mask_ref, wqkv_ref, bqkv_ref, wo_ref, bo_ref,
                          w1_ref, b1_ref, w2_ref, b2_ref, ln_ref, o_ref,
                          *, num_heads, eps):
    x = x_ref[0]                    # [S, D]
    d = x.shape[-1]
    mask = mask_ref[0]              # [S, S] additive (0 / NEG_INF)
    ln = ln_ref[...]                # [4, D] rows: g1, b1, g2, b2

    # fused QKV projection
    qkv = jnp.dot(x, wqkv_ref[...], preferred_element_type=jnp.float32) + bqkv_ref[...]
    attn = _mha(qkv[:, :d], qkv[:, d:2 * d], qkv[:, 2 * d:],
                wo_ref[...], bo_ref[...], mask, num_heads)
    x1 = _ln(x + attn, ln[0:1], ln[1:2], eps)

    # feed-forward
    h = jnp.maximum(jnp.dot(x1, w1_ref[...], preferred_element_type=jnp.float32)
                    + b1_ref[...], 0.0)
    ff = jnp.dot(h, w2_ref[...], preferred_element_type=jnp.float32) + b2_ref[...]
    o_ref[0] = _ln(x1 + ff, ln[2:3], ln[3:4], eps).astype(o_ref.dtype)


def _decoder_layer_kernel(x_ref, mem_ref, mask_ref,
                          wqkv_ref, bqkv_ref, wo_s_ref, bo_s_ref,
                          wq_c_ref, bq_c_ref, wkv_c_ref, bkv_c_ref, wo_c_ref, bo_c_ref,
                          w1_ref, b1_ref, w2_ref, b2_ref, ln_ref, o_ref,
                          *, num_heads, eps):
    x = x_ref[0]                    # [St, D]
    mem = mem_ref[0]                # [Ss, D]
    d = x.shape[-1]
    mask = mask_ref[0]              # [St, St] additive (padding OR causal)
    ln = ln_ref[...]                # [6, D] rows: g1, b1, g2, b2, g3, b3

    # masked self-attention (fused QKV)
    qkv = jnp.dot(x, wqkv_ref[...], preferred_element_type=jnp.float32) + bqkv_ref[...]
    sa = _mha(qkv[:, :d], qkv[:, d:2 * d], qkv[:, 2 * d:],
              wo_s_ref[...], bo_s_ref[...], mask, num_heads)
    x1 = _ln(x + sa, ln[0:1], ln[1:2], eps)

    # cross-attention over encoder memory (fused KV projection of memory).
    # NOTE: the reference Mol2Mol.forward() passes neither memory_mask nor
    # memory_key_padding_mask to transformer.decoder(), so cross-attention is unmasked.
    q = jnp.dot(x1, wq_c_ref[...], preferred_element_type=jnp.float32) + bq_c_ref[...]
    kv = jnp.dot(mem, wkv_c_ref[...], preferred_element_type=jnp.float32) + bkv_c_ref[...]
    ca = _mha(q, kv[:, :d], kv[:, d:], wo_c_ref[...], bo_c_ref[...], None, num_heads)
    x2 = _ln(x1 + ca, ln[2:3], ln[3:4], eps)

    # feed-forward
    h = jnp.maximum(jnp.dot(x2, w1_ref[...], preferred_element_type=jnp.float32)
                    + b1_ref[...], 0.0)
    ff = jnp.dot(h, w2_ref[...], preferred_element_type=jnp.float32) + b2_ref[...]
    o_ref[0] = _ln(x2 + ff, ln[4:5], ln[5:6], eps).astype(o_ref.dtype)


def _layer_norm_kernel(x_ref, ln_ref, o_ref, *, eps):
    ln = ln_ref[...]                # [2, D]
    o_ref[0] = _ln(x_ref[0], ln[0:1], ln[1:2], eps).astype(o_ref.dtype)


def _generator_kernel(y_ref, ln_ref, w_ref, b_ref, o_ref, *, eps):
    """Final decoder LayerNorm + generator linear + exact log_softmax, fused."""
    ln = ln_ref[...]                # [2, D]
    y = _ln(y_ref[0], ln[0:1], ln[1:2], eps)
    logits = jnp.dot(y, w_ref[...], preferred_element_type=jnp.float32) + b_ref[...]
    m = jnp.max(logits, axis=-1, keepdims=True)
    s = logits - m
    o_ref[0] = (s - jnp.log(jnp.sum(jnp.exp(s), axis=-1, keepdims=True))).astype(o_ref.dtype)


# ----------------------------------------------------------------------------
# pallas_call wrappers
# ----------------------------------------------------------------------------

def _const_spec(shape):
    """Full-array block, same block for every grid step (stays VMEM-resident)."""
    zeros = (0,) * len(shape)
    return pl.BlockSpec(shape, lambda i: zeros)


_PARALLEL = pltpu.CompilerParams(dimension_semantics=("parallel",))


def encoder_layer(x, add_mask, p, num_heads, eps):
    b, s, d = x.shape
    f = p["w1"].shape[1]
    return pl.pallas_call(
        functools.partial(_encoder_layer_kernel, num_heads=num_heads, eps=eps),
        grid=(b,),
        out_shape=jax.ShapeDtypeStruct((b, s, d), jnp.float32),
        in_specs=[
            pl.BlockSpec((1, s, d), lambda i: (i, 0, 0)),    # x
            pl.BlockSpec((1, s, s), lambda i: (i, 0, 0)),    # additive self-attn mask
            _const_spec((d, 3 * d)), _const_spec((1, 3 * d)),  # wqkv, bqkv
            _const_spec((d, d)), _const_spec((1, d)),          # wo, bo
            _const_spec((d, f)), _const_spec((1, f)),          # w1, b1
            _const_spec((f, d)), _const_spec((1, d)),          # w2, b2
            _const_spec((4, d)),                               # ln (g1,b1,g2,b2)
        ],
        out_specs=pl.BlockSpec((1, s, d), lambda i: (i, 0, 0)),
        compiler_params=_PARALLEL,
    )(x, add_mask, p["wqkv"], p["bqkv"], p["wo"], p["bo"],
      p["w1"], p["b1"], p["w2"], p["b2"], p["ln"])


def decoder_layer(x, memory, self_mask, p, num_heads, eps):
    b, st, d = x.shape
    ss = memory.shape[1]
    f = p["w1"].shape[1]
    return pl.pallas_call(
        functools.partial(_decoder_layer_kernel, num_heads=num_heads, eps=eps),
        grid=(b,),
        out_shape=jax.ShapeDtypeStruct((b, st, d), jnp.float32),
        in_specs=[
            pl.BlockSpec((1, st, d), lambda i: (i, 0, 0)),     # x
            pl.BlockSpec((1, ss, d), lambda i: (i, 0, 0)),     # memory
            pl.BlockSpec((1, st, st), lambda i: (i, 0, 0)),    # additive self-attn mask
            _const_spec((d, 3 * d)), _const_spec((1, 3 * d)),  # wqkv_s, bqkv_s
            _const_spec((d, d)), _const_spec((1, d)),          # wo_s, bo_s
            _const_spec((d, d)), _const_spec((1, d)),          # wq_c, bq_c
            _const_spec((d, 2 * d)), _const_spec((1, 2 * d)),  # wkv_c, bkv_c
            _const_spec((d, d)), _const_spec((1, d)),          # wo_c, bo_c
            _const_spec((d, f)), _const_spec((1, f)),          # w1, b1
            _const_spec((f, d)), _const_spec((1, d)),          # w2, b2
            _const_spec((6, d)),                               # ln (3 x (g, b))
        ],
        out_specs=pl.BlockSpec((1, st, d), lambda i: (i, 0, 0)),
        compiler_params=_PARALLEL,
    )(x, memory, self_mask,
      p["wqkv_s"], p["bqkv_s"], p["wo_s"], p["bo_s"],
      p["wq_c"], p["bq_c"], p["wkv_c"], p["bkv_c"], p["wo_c"], p["bo_c"],
      p["w1"], p["b1"], p["w2"], p["b2"], p["ln"])


def layer_norm(x, ln, eps):
    b, s, d = x.shape
    return pl.pallas_call(
        functools.partial(_layer_norm_kernel, eps=eps),
        grid=(b,),
        out_shape=jax.ShapeDtypeStruct((b, s, d), jnp.float32),
        in_specs=[pl.BlockSpec((1, s, d), lambda i: (i, 0, 0)),
                  _const_spec((2, d))],
        out_specs=pl.BlockSpec((1, s, d), lambda i: (i, 0, 0)),
        compiler_params=_PARALLEL,
    )(x, ln)


def generator_head(y, ln, gen_w, gen_b, eps):
    b, st, d = y.shape
    v = gen_w.shape[1]
    return pl.pallas_call(
        functools.partial(_generator_kernel, eps=eps),
        grid=(b,),
        out_shape=jax.ShapeDtypeStruct((b, st, v), jnp.float32),
        in_specs=[pl.BlockSpec((1, st, d), lambda i: (i, 0, 0)),
                  _const_spec((2, d)),
                  _const_spec((d, v)),
                  _const_spec((1, v))],
        out_specs=pl.BlockSpec((1, st, v), lambda i: (i, 0, 0)),
        compiler_params=_PARALLEL,
    )(y, ln, gen_w, gen_b)


# ----------------------------------------------------------------------------
# Glue (embedding lookup, positional encoding, mask construction, layer wiring)
# ----------------------------------------------------------------------------

def positional_encoding(max_len, d_model):
    pos = jnp.arange(max_len, dtype=jnp.float32)[:, None]
    div = jnp.exp(jnp.arange(0, d_model, 2, dtype=jnp.float32)
                  * (-math.log(10000.0) / d_model))
    pe = jnp.zeros((max_len, d_model), jnp.float32)
    pe = pe.at[:, 0::2].set(jnp.sin(pos * div))
    pe = pe.at[:, 1::2].set(jnp.cos(pos * div))
    return pe


def mol2mol_forward(params, src, src_mask, trg, trg_mask, cfg):
    d, h, eps = cfg["d_model"], cfg["heads"], cfg["eps"]
    b, ss = src.shape
    st = trg.shape[1]

    pe = positional_encoding(max(ss, st), d)
    # token embedding + PositionalEncoding (dropout = identity, eval mode)
    src_emb = params["emb"][src] + pe[None, :ss, :]
    trg_emb = params["emb"][trg] + pe[None, :st, :]

    # Additive attention masks built ONCE per batch element ([B, Sq, Sk]);
    # broadcast over heads happens inside the fused kernels.
    src_add = jnp.broadcast_to(
        jnp.where(src_mask[:, None, :], NEG_INF, 0.0).astype(jnp.float32), (b, ss, ss))
    causal = jnp.triu(jnp.ones((st, st), dtype=bool), k=1)
    trg_comb = jnp.logical_or(trg_mask[:, None, :], causal[None, :, :])
    trg_add = jnp.where(trg_comb, NEG_INF, 0.0).astype(jnp.float32)

    # Encoder stack + final encoder LayerNorm (nn.Transformer default norm)
    x = src_emb
    for p in params["enc"]:
        x = encoder_layer(x, src_add, p, h, eps)
    memory = layer_norm(x, params["enc_norm"], eps)

    # Decoder stack; final decoder LayerNorm is fused into the generator kernel
    y = trg_emb
    for p in params["dec"]:
        y = decoder_layer(y, memory, trg_add, p, h, eps)

    # final decoder norm + generator + log_softmax (one fused kernel)
    return generator_head(y, params["dec_norm"], params["gen_w"], params["gen_b"], eps)


# ----------------------------------------------------------------------------
# Deterministic parameter initialization (synthetic weights, no checkpoint)
# ----------------------------------------------------------------------------

def init_params(key, cfg):
    v, d, f, layers = cfg["vocab"], cfg["d_model"], cfg["ffn"], cfg["layers"]
    keys = iter(jax.random.split(key, 4096))

    def w(shape, scale=0.05):
        return (scale * jax.random.normal(next(keys), shape)).astype(jnp.float32)

    def zrow(n):
        return jnp.zeros((1, n), jnp.float32)

    def ln_stack(n_norms):
        rows = []
        for _ in range(n_norms):
            rows.append(jnp.ones((1, d), jnp.float32))   # gamma
            rows.append(jnp.zeros((1, d), jnp.float32))  # beta
        return jnp.concatenate(rows, axis=0)

    def enc_layer_p():
        return dict(
            wqkv=w((d, 3 * d)), bqkv=zrow(3 * d),
            wo=w((d, d)), bo=zrow(d),
            w1=w((d, f)), b1=zrow(f),
            w2=w((f, d)), b2=zrow(d),
            ln=ln_stack(2),
        )

    def dec_layer_p():
        return dict(
            wqkv_s=w((d, 3 * d)), bqkv_s=zrow(3 * d),
            wo_s=w((d, d)), bo_s=zrow(d),
            wq_c=w((d, d)), bq_c=zrow(d),
            wkv_c=w((d, 2 * d)), bkv_c=zrow(2 * d),
            wo_c=w((d, d)), bo_c=zrow(d),
            w1=w((d, f)), b1=zrow(f),
            w2=w((f, d)), b2=zrow(d),
            ln=ln_stack(3),
        )

    return dict(
        emb=w((v, d), 1.0),
        enc=[enc_layer_p() for _ in range(layers)],
        dec=[dec_layer_p() for _ in range(layers)],
        enc_norm=ln_stack(1),
        dec_norm=ln_stack(1),
        gen_w=w((d, v)), gen_b=zrow(v),
    )


# ----------------------------------------------------------------------------
# Driver
# ----------------------------------------------------------------------------

if __name__ == "__main__":
    cfg = dict(vocab=32, d_model=32, heads=4, layers=2, ffn=64, eps=1e-6)

    key = jax.random.PRNGKey(0)
    pkey, skey, tkey = jax.random.split(key, 3)
    params = init_params(pkey, cfg)

    B, S_SRC, S_TRG = 2, 8, 8
    src = jax.random.randint(skey, (B, S_SRC), 3, cfg["vocab"]).astype(jnp.int32)
    trg = jax.random.randint(tkey, (B, S_TRG), 3, cfg["vocab"]).astype(jnp.int32)
    # pad some trailing positions with token id 0 (the pad token)
    src = src.at[0, 6:].set(0)
    trg = trg.at[1, 5:].set(0)
    src_mask = (src == 0)
    trg_mask = (trg == 0)

    out = mol2mol_forward(params, src, src_mask, trg, trg_mask, cfg)
    out = jax.block_until_ready(out)

    assert out.shape == (B, S_TRG, cfg["vocab"]), out.shape
    assert bool(jnp.all(jnp.isfinite(out)))
    # log_softmax rows must exponentiate to a probability distribution
    assert bool(jnp.allclose(jnp.sum(jnp.exp(out), axis=-1), 1.0, atol=1e-3))
    print("KERNEL_OK")
</pallas_src>

<mosaic_0001>
module attributes {stable_mosaic.version = 11 : i64} {
  func.func @_encoder_layer_kernel(%arg0: i32, %arg1: memref<1x8x32xf32, #tpu.memory_space<vmem>>, %arg2: memref<1x8x8xf32, #tpu.memory_space<vmem>>, %arg3: memref<32x96xf32, #tpu.memory_space<vmem>>, %arg4: memref<1x96xf32, #tpu.memory_space<vmem>>, %arg5: memref<32x32xf32, #tpu.memory_space<vmem>>, %arg6: memref<1x32xf32, #tpu.memory_space<vmem>>, %arg7: memref<32x64xf32, #tpu.memory_space<vmem>>, %arg8: memref<1x64xf32, #tpu.memory_space<vmem>>, %arg9: memref<64x32xf32, #tpu.memory_space<vmem>>, %arg10: memref<1x32xf32, #tpu.memory_space<vmem>>, %arg11: memref<4x32xf32, #tpu.memory_space<vmem>>, %arg12: memref<1x8x32xf32, #tpu.memory_space<vmem>>) attributes {dimension_semantics = [#tpu.dimension_semantics<parallel>], iteration_bounds = array<i64: 2>, scalar_prefetch = 0 : i64, scratch_operands = 0 : i64, tpu.core_type = #tpu.core_type<tc>, window_params = [{transform_indices = @transform_0, window_bounds = array<i64: 1, 8, 32>}, {transform_indices = @transform_1, window_bounds = array<i64: 1, 8, 8>}, {pipeline_mode = #tpu.pipeline_mode<synchronous>, transform_indices = @transform_2, window_bounds = array<i64: 32, 96>}, {pipeline_mode = #tpu.pipeline_mode<synchronous>, transform_indices = @transform_3, window_bounds = array<i64: 1, 96>}, {pipeline_mode = #tpu.pipeline_mode<synchronous>, transform_indices = @transform_4, window_bounds = array<i64: 32, 32>}, {pipeline_mode = #tpu.pipeline_mode<synchronous>, transform_indices = @transform_5, window_bounds = array<i64: 1, 32>}, {pipeline_mode = #tpu.pipeline_mode<synchronous>, transform_indices = @transform_6, window_bounds = array<i64: 32, 64>}, {pipeline_mode = #tpu.pipeline_mode<synchronous>, transform_indices = @transform_7, window_bounds = array<i64: 1, 64>}, {pipeline_mode = #tpu.pipeline_mode<synchronous>, transform_indices = @transform_8, window_bounds = array<i64: 64, 32>}, {pipeline_mode = #tpu.pipeline_mode<synchronous>, transform_indices = @transform_9, window_bounds = array<i64: 1, 32>}, {pipeline_mode = #tpu.pipeline_mode<synchronous>, transform_indices = @transform_10, window_bounds = array<i64: 4, 32>}, {transform_indices = @transform_11, window_bounds = array<i64: 1, 8, 32>}]} {
    %c0 = arith.constant 0 : index
    %c0_0 = arith.constant 0 : index
    %c0_1 = arith.constant 0 : index
    %0 = vector.load %arg1[%c0, %c0_0, %c0_1] : memref<1x8x32xf32, #tpu.memory_space<vmem>>, vector<1x8x32xf32>
    %1 = vector.shape_cast %0 : vector<1x8x32xf32> to vector<8x32xf32>
    %c0_2 = arith.constant 0 : index
    %c0_3 = arith.constant 0 : index
    %c0_4 = arith.constant 0 : index
    %2 = vector.load %arg2[%c0_2, %c0_3, %c0_4] : memref<1x8x8xf32, #tpu.memory_space<vmem>>, vector<1x8x8xf32>
    %3 = vector.shape_cast %2 : vector<1x8x8xf32> to vector<8x8xf32>
    %c0_5 = arith.constant 0 : index
    %c0_6 = arith.constant 0 : index
    %4 = vector.load %arg11[%c0_5, %c0_6] : memref<4x32xf32, #tpu.memory_space<vmem>>, vector<4x32xf32>
    %c0_7 = arith.constant 0 : index
    %c0_8 = arith.constant 0 : index
    %5 = vector.load %arg3[%c0_7, %c0_8] : memref<32x96xf32, #tpu.memory_space<vmem>>, vector<32x96xf32>
    %cst = arith.constant dense<0.000000e+00> : vector<8x96xf32>
    %6 = tpu.matmul %1, %5, %cst {dimension_numbers = #tpu.dot_dimension_numbers<[1], [0], [0], [1], [0, 0, 1, 1], [], []>} : vector<8x32xf32>, vector<32x96xf32>, vector<8x96xf32> -> vector<8x96xf32>
    %c0_9 = arith.constant 0 : index
    %c0_10 = arith.constant 0 : index
    %7 = vector.load %arg4[%c0_9, %c0_10] : memref<1x96xf32, #tpu.memory_space<vmem>>, vector<1x96xf32>
    %8 = vector.broadcast %7 : vector<1x96xf32> to vector<8x96xf32>
    %9 = arith.addf %6, %8 : vector<8x96xf32>
    %10 = vector.extract_strided_slice %9 {offsets = [0, 0], sizes = [8, 32], strides = [1, 1]} : vector<8x96xf32> to vector<8x32xf32>
    %11 = vector.extract_strided_slice %9 {offsets = [0, 32], sizes = [8, 32], strides = [1, 1]} : vector<8x96xf32> to vector<8x32xf32>
    %12 = vector.extract_strided_slice %9 {offsets = [0, 64], sizes = [8, 32], strides = [1, 1]} : vector<8x96xf32> to vector<8x32xf32>
    %c0_11 = arith.constant 0 : index
    %c0_12 = arith.constant 0 : index
    %13 = vector.load %arg5[%c0_11, %c0_12] : memref<32x32xf32, #tpu.memory_space<vmem>>, vector<32x32xf32>
    %c0_13 = arith.constant 0 : index
    %c0_14 = arith.constant 0 : index
    %14 = vector.load %arg6[%c0_13, %c0_14] : memref<1x32xf32, #tpu.memory_space<vmem>>, vector<1x32xf32>
    %15 = vector.extract_strided_slice %10 {offsets = [0, 0], sizes = [8, 8], strides = [1, 1]} : vector<8x32xf32> to vector<8x8xf32>
    %16 = vector.extract_strided_slice %11 {offsets = [0, 0], sizes = [8, 8], strides = [1, 1]} : vector<8x32xf32> to vector<8x8xf32>
    %17 = vector.extract_strided_slice %12 {offsets = [0, 0], sizes = [8, 8], strides = [1, 1]} : vector<8x32xf32> to vector<8x8xf32>
    %cst_15 = arith.constant dense<0.000000e+00> : vector<8x8xf32>
    %18 = tpu.matmul %15, %16, %cst_15 {dimension_numbers = #tpu.dot_dimension_numbers<[1], [1], [0], [0], [0, 0, 1, 0], [], []>} : vector<8x8xf32>, vector<8x8xf32>, vector<8x8xf32> -> vector<8x8xf32>
    %cst_16 = arith.constant 0.353553385 : f32
    %19 = vector.broadcast %cst_16 : f32 to vector<8x8xf32>
    %20 = arith.mulf %18, %19 : vector<8x8xf32>
    %21 = arith.addf %20, %3 : vector<8x8xf32>
    %cst_17 = arith.constant dense<0xFF800000> : vector<8xf32>
    %22 = vector.multi_reduction <maximumf>, %21, %cst_17 [1] : vector<8x8xf32> to vector<8xf32>
    %23 = vector.shape_cast %22 : vector<8xf32> to vector<8x1xf32>
    %24 = vector.broadcast %23 : vector<8x1xf32> to vector<8x8xf32>
    %25 = arith.subf %21, %24 : vector<8x8xf32>
    %26 = math.exp %25 : vector<8x8xf32>
    %cst_18 = arith.constant dense<0.000000e+00> : vector<8xf32>
    %27 = vector.multi_reduction <add>, %26, %cst_18 [1] : vector<8x8xf32> to vector<8xf32>
    %28 = vector.shape_cast %27 : vector<8xf32> to vector<8x1xf32>
    %29 = tpu.reciprocal %28 {approx = true} : vector<8x1xf32> -> vector<8x1xf32>
    %30 = vector.broadcast %29 : vector<8x1xf32> to vector<8x8xf32>
    %31 = arith.mulf %26, %30 : vector<8x8xf32>
    %cst_19 = arith.constant dense<0.000000e+00> : vector<8x8xf32>
    %32 = tpu.matmul %31, %17, %cst_19 {dimension_numbers = #tpu.dot_dimension_numbers<[1], [0], [0], [1], [0, 0, 1, 1], [], []>} : vector<8x8xf32>, vector<8x8xf32>, vector<8x8xf32> -> vector<8x8xf32>
    %33 = vector.extract_strided_slice %13 {offsets = [0, 0], sizes = [8, 32], strides = [1, 1]} : vector<32x32xf32> to vector<8x32xf32>
    %cst_20 = arith.constant dense<0.000000e+00> : vector<8x32xf32>
    %34 = tpu.matmul %32, %33, %cst_20 {dimension_numbers = #tpu.dot_dimension_numbers<[1], [0], [0], [1], [0, 0, 1, 1], [], []>} : vector<8x8xf32>, vector<8x32xf32>, vector<8x32xf32> -> vector<8x32xf32>
    %35 = vector.extract_strided_slice %10 {offsets = [0, 8], sizes = [8, 8], strides = [1, 1]} : vector<8x32xf32> to vector<8x8xf32>
    %36 = vector.extract_strided_slice %11 {offsets = [0, 8], sizes = [8, 8], strides = [1, 1]} : vector<8x32xf32> to vector<8x8xf32>
    %37 = vector.extract_strided_slice %12 {offsets = [0, 8], sizes = [8, 8], strides = [1, 1]} : vector<8x32xf32> to vector<8x8xf32>
    %cst_21 = arith.constant dense<0.000000e+00> : vector<8x8xf32>
    %38 = tpu.matmul %35, %36, %cst_21 {dimension_numbers = #tpu.dot_dimension_numbers<[1], [1], [0], [0], [0, 0, 1, 0], [], []>} : vector<8x8xf32>, vector<8x8xf32>, vector<8x8xf32> -> vector<8x8xf32>
    %cst_22 = arith.constant 0.353553385 : f32
    %39 = vector.broadcast %cst_22 : f32 to vector<8x8xf32>
    %40 = arith.mulf %38, %39 : vector<8x8xf32>
    %41 = arith.addf %40, %3 : vector<8x8xf32>
    %cst_23 = arith.constant dense<0xFF800000> : vector<8xf32>
    %42 = vector.multi_reduction <maximumf>, %41, %cst_23 [1] : vector<8x8xf32> to vector<8xf32>
    %43 = vector.shape_cast %42 : vector<8xf32> to vector<8x1xf32>
    %44 = vector.broadcast %43 : vector<8x1xf32> to vector<8x8xf32>
    %45 = arith.subf %41, %44 : vector<8x8xf32>
    %46 = math.exp %45 : vector<8x8xf32>
    %cst_24 = arith.constant dense<0.000000e+00> : vector<8xf32>
    %47 = vector.multi_reduction <add>, %46, %cst_24 [1] : vector<8x8xf32> to vector<8xf32>
    %48 = vector.shape_cast %47 : vector<8xf32> to vector<8x1xf32>
    %49 = tpu.reciprocal %48 {approx = true} : vector<8x1xf32> -> vector<8x1xf32>
    %50 = vector.broadcast %49 : vector<8x1xf32> to vector<8x8xf32>
    %51 = arith.mulf %46, %50 : vector<8x8xf32>
    %cst_25 = arith.constant dense<0.000000e+00> : vector<8x8xf32>
    %52 = tpu.matmul %51, %37, %cst_25 {dimension_numbers = #tpu.dot_dimension_numbers<[1], [0], [0], [1], [0, 0, 1, 1], [], []>} : vector<8x8xf32>, vector<8x8xf32>, vector<8x8xf32> -> vector<8x8xf32>
    %53 = vector.extract_strided_slice %13 {offsets = [8, 0], sizes = [8, 32], strides = [1, 1]} : vector<32x32xf32> to vector<8x32xf32>
    %cst_26 = arith.constant dense<0.000000e+00> : vector<8x32xf32>
    %54 = tpu.matmul %52, %53, %cst_26 {dimension_numbers = #tpu.dot_dimension_numbers<[1], [0], [0], [1], [0, 0, 1, 1], [], []>} : vector<8x8xf32>, vector<8x32xf32>, vector<8x32xf32> -> vector<8x32xf32>
    %55 = arith.addf %34, %54 : vector<8x32xf32>
    %56 = vector.extract_strided_slice %10 {offsets = [0, 16], sizes = [8, 8], strides = [1, 1]} : vector<8x32xf32> to vector<8x8xf32>
    %57 = vector.extract_strided_slice %11 {offsets = [0, 16], sizes = [8, 8], strides = [1, 1]} : vector<8x32xf32> to vector<8x8xf32>
    %58 = vector.extract_strided_slice %12 {offsets = [0, 16], sizes = [8, 8], strides = [1, 1]} : vector<8x32xf32> to vector<8x8xf32>
    %cst_27 = arith.constant dense<0.000000e+00> : vector<8x8xf32>
    %59 = tpu.matmul %56, %57, %cst_27 {dimension_numbers = #tpu.dot_dimension_numbers<[1], [1], [0], [0], [0, 0, 1, 0], [], []>} : vector<8x8xf32>, vector<8x8xf32>, vector<8x8xf32> -> vector<8x8xf32>
    %cst_28 = arith.constant 0.353553385 : f32
    %60 = vector.broadcast %cst_28 : f32 to vector<8x8xf32>
    %61 = arith.mulf %59, %60 : vector<8x8xf32>
    %62 = arith.addf %61, %3 : vector<8x8xf32>
    %cst_29 = arith.constant dense<0xFF800000> : vector<8xf32>
    %63 = vector.multi_reduction <maximumf>, %62, %cst_29 [1] : vector<8x8xf32> to vector<8xf32>
    %64 = vector.shape_cast %63 : vector<8xf32> to vector<8x1xf32>
    %65 = vector.broadcast %64 : vector<8x1xf32> to vector<8x8xf32>
    %66 = arith.subf %62, %65 : vector<8x8xf32>
    %67 = math.exp %66 : vector<8x8xf32>
    %cst_30 = arith.constant dense<0.000000e+00> : vector<8xf32>
    %68 = vector.multi_reduction <add>, %67, %cst_30 [1] : vector<8x8xf32> to vector<8xf32>
    %69 = vector.shape_cast %68 : vector<8xf32> to vector<8x1xf32>
    %70 = tpu.reciprocal %69 {approx = true} : vector<8x1xf32> -> vector<8x1xf32>
    %71 = vector.broadcast %70 : vector<8x1xf32> to vector<8x8xf32>
    %72 = arith.mulf %67, %71 : vector<8x8xf32>
    %cst_31 = arith.constant dense<0.000000e+00> : vector<8x8xf32>
    %73 = tpu.matmul %72, %58, %cst_31 {dimension_numbers = #tpu.dot_dimension_numbers<[1], [0], [0], [1], [0, 0, 1, 1], [], []>} : vector<8x8xf32>, vector<8x8xf32>, vector<8x8xf32> -> vector<8x8xf32>
    %74 = vector.extract_strided_slice %13 {offsets = [16, 0], sizes = [8, 32], strides = [1, 1]} : vector<32x32xf32> to vector<8x32xf32>
    %cst_32 = arith.constant dense<0.000000e+00> : vector<8x32xf32>
    %75 = tpu.matmul %73, %74, %cst_32 {dimension_numbers = #tpu.dot_dimension_numbers<[1], [0], [0], [1], [0, 0, 1, 1], [], []>} : vector<8x8xf32>, vector<8x32xf32>, vector<8x32xf32> -> vector<8x32xf32>
    %76 = arith.addf %55, %75 : vector<8x32xf32>
    %77 = vector.extract_strided_slice %10 {offsets = [0, 24], sizes = [8, 8], strides = [1, 1]} : vector<8x32xf32> to vector<8x8xf32>
    %78 = vector.extract_strided_slice %11 {offsets = [0, 24], sizes = [8, 8], strides = [1, 1]} : vector<8x32xf32> to vector<8x8xf32>
    %79 = vector.extract_strided_slice %12 {offsets = [0, 24], sizes = [8, 8], strides = [1, 1]} : vector<8x32xf32> to vector<8x8xf32>
    %cst_33 = arith.constant dense<0.000000e+00> : vector<8x8xf32>
    %80 = tpu.matmul %77, %78, %cst_33 {dimension_numbers = #tpu.dot_dimension_numbers<[1], [1], [0], [0], [0, 0, 1, 0], [], []>} : vector<8x8xf32>, vector<8x8xf32>, vector<8x8xf32> -> vector<8x8xf32>
    %cst_34 = arith.constant 0.353553385 : f32
    %81 = vector.broadcast %cst_34 : f32 to vector<8x8xf32>
    %82 = arith.mulf %80, %81 : vector<8x8xf32>
    %83 = arith.addf %82, %3 : vector<8x8xf32>
    %cst_35 = arith.constant dense<0xFF800000> : vector<8xf32>
    %84 = vector.multi_reduction <maximumf>, %83, %cst_35 [1] : vector<8x8xf32> to vector<8xf32>
    %85 = vector.shape_cast %84 : vector<8xf32> to vector<8x1xf32>
    %86 = vector.broadcast %85 : vector<8x1xf32> to vector<8x8xf32>
    %87 = arith.subf %83, %86 : vector<8x8xf32>
    %88 = math.exp %87 : vector<8x8xf32>
    %cst_36 = arith.constant dense<0.000000e+00> : vector<8xf32>
    %89 = vector.multi_reduction <add>, %88, %cst_36 [1] : vector<8x8xf32> to vector<8xf32>
    %90 = vector.shape_cast %89 : vector<8xf32> to vector<8x1xf32>
    %91 = tpu.reciprocal %90 {approx = true} : vector<8x1xf32> -> vector<8x1xf32>
    %92 = vector.broadcast %91 : vector<8x1xf32> to vector<8x8xf32>
    %93 = arith.mulf %88, %92 : vector<8x8xf32>
    %cst_37 = arith.constant dense<0.000000e+00> : vector<8x8xf32>
    %94 = tpu.matmul %93, %79, %cst_37 {dimension_numbers = #tpu.dot_dimension_numbers<[1], [0], [0], [1], [0, 0, 1, 1], [], []>} : vector<8x8xf32>, vector<8x8xf32>, vector<8x8xf32> -> vector<8x8xf32>
    %95 = vector.extract_strided_slice %13 {offsets = [24, 0], sizes = [8, 32], strides = [1, 1]} : vector<32x32xf32> to vector<8x32xf32>
    %cst_38 = arith.constant dense<0.000000e+00> : vector<8x32xf32>
    %96 = tpu.matmul %94, %95, %cst_38 {dimension_numbers = #tpu.dot_dimension_numbers<[1], [0], [0], [1], [0, 0, 1, 1], [], []>} : vector<8x8xf32>, vector<8x32xf32>, vector<8x32xf32> -> vector<8x32xf32>
    %97 = arith.addf %76, %96 : vector<8x32xf32>
    %98 = vector.broadcast %14 : vector<1x32xf32> to vector<8x32xf32>
    %99 = arith.addf %97, %98 : vector<8x32xf32>
    %100 = arith.addf %1, %99 : vector<8x32xf32>
    %101 = vector.extract_strided_slice %4 {offsets = [0, 0], sizes = [1, 32], strides = [1, 1]} : vector<4x32xf32> to vector<1x32xf32>
    %102 = vector.extract_strided_slice %4 {offsets = [1, 0], sizes = [1, 32], strides = [1, 1]} : vector<4x32xf32> to vector<1x32xf32>
    %cst_39 = arith.constant dense<0.000000e+00> : vector<8xf32>
    %103 = vector.multi_reduction <add>, %100, %cst_39 [1] : vector<8x32xf32> to vector<8xf32>
    %104 = vector.shape_cast %103 : vector<8xf32> to vector<8x1xf32>
    %cst_40 = arith.constant 3.200000e+01 : f32
    %105 = vector.broadcast %cst_40 : f32 to vector<8x1xf32>
    %106 = arith.divf %104, %105 : vector<8x1xf32>
    %107 = vector.broadcast %106 : vector<8x1xf32> to vector<8x32xf32>
    %108 = arith.subf %100, %107 : vector<8x32xf32>
    %109 = arith.mulf %108, %108 : vector<8x32xf32>
    %cst_41 = arith.constant dense<0.000000e+00> : vector<8xf32>
    %110 = vector.multi_reduction <add>, %109, %cst_41 [1] : vector<8x32xf32> to vector<8xf32>
    %111 = vector.shape_cast %110 : vector<8xf32> to vector<8x1xf32>
    %cst_42 = arith.constant 3.200000e+01 : f32
    %112 = vector.broadcast %cst_42 : f32 to vector<8x1xf32>
    %113 = arith.divf %111, %112 : vector<8x1xf32>
    %cst_43 = arith.constant 9.99999997E-7 : f32
    %114 = vector.broadcast %cst_43 : f32 to vector<8x1xf32>
    %115 = arith.addf %113, %114 : vector<8x1xf32>
    %116 = math.rsqrt %115 : vector<8x1xf32>
    %117 = vector.broadcast %116 : vector<8x1xf32> to vector<8x32xf32>
    %118 = arith.mulf %108, %117 : vector<8x32xf32>
    %119 = vector.broadcast %101 : vector<1x32xf32> to vector<8x32xf32>
    %120 = arith.mulf %118, %119 : vector<8x32xf32>
    %121 = vector.broadcast %102 : vector<1x32xf32> to vector<8x32xf32>
    %122 = arith.addf %120, %121 : vector<8x32xf32>
    %c0_44 = arith.constant 0 : index
    %c0_45 = arith.constant 0 : index
    %123 = vector.load %arg7[%c0_44, %c0_45] : memref<32x64xf32, #tpu.memory_space<vmem>>, vector<32x64xf32>
    %cst_46 = arith.constant dense<0.000000e+00> : vector<8x64xf32>
    %124 = tpu.matmul %122, %123, %cst_46 {dimension_numbers = #tpu.dot_dimension_numbers<[1], [0], [0], [1], [0, 0, 1, 1], [], []>} : vector<8x32xf32>, vector<32x64xf32>, vector<8x64xf32> -> vector<8x64xf32>
    %c0_47 = arith.constant 0 : index
    %c0_48 = arith.constant 0 : index
    %125 = vector.load %arg8[%c0_47, %c0_48] : memref<1x64xf32, #tpu.memory_space<vmem>>, vector<1x64xf32>
    %126 = vector.broadcast %125 : vector<1x64xf32> to vector<8x64xf32>
    %127 = arith.addf %124, %126 : vector<8x64xf32>
    %cst_49 = arith.constant 0.000000e+00 : f32
    %128 = vector.broadcast %cst_49 : f32 to vector<8x64xf32>
    %129 = arith.maximumf %127, %128 : vector<8x64xf32>
    %c0_50 = arith.constant 0 : index
    %c0_51 = arith.constant 0 : index
    %130 = vector.load %arg9[%c0_50, %c0_51] : memref<64x32xf32, #tpu.memory_space<vmem>>, vector<64x32xf32>
    %cst_52 = arith.constant dense<0.000000e+00> : vector<8x32xf32>
    %131 = tpu.matmul %129, %130, %cst_52 {dimension_numbers = #tpu.dot_dimension_numbers<[1], [0], [0], [1], [0, 0, 1, 1], [], []>} : vector<8x64xf32>, vector<64x32xf32>, vector<8x32xf32> -> vector<8x32xf32>
    %c0_53 = arith.constant 0 : index
    %c0_54 = arith.constant 0 : index
    %132 = vector.load %arg10[%c0_53, %c0_54] : memref<1x32xf32, #tpu.memory_space<vmem>>, vector<1x32xf32>
    %133 = vector.broadcast %132 : vector<1x32xf32> to vector<8x32xf32>
    %134 = arith.addf %131, %133 : vector<8x32xf32>
    %135 = arith.addf %122, %134 : vector<8x32xf32>
    %136 = vector.extract_strided_slice %4 {offsets = [2, 0], sizes = [1, 32], strides = [1, 1]} : vector<4x32xf32> to vector<1x32xf32>
    %137 = vector.extract_strided_slice %4 {offsets = [3, 0], sizes = [1, 32], strides = [1, 1]} : vector<4x32xf32> to vector<1x32xf32>
    %cst_55 = arith.constant dense<0.000000e+00> : vector<8xf32>
    %138 = vector.multi_reduction <add>, %135, %cst_55 [1] : vector<8x32xf32> to vector<8xf32>
    %139 = vector.shape_cast %138 : vector<8xf32> to vector<8x1xf32>
    %cst_56 = arith.constant 3.200000e+01 : f32
    %140 = vector.broadcast %cst_56 : f32 to vector<8x1xf32>
    %141 = arith.divf %139, %140 : vector<8x1xf32>
    %142 = vector.broadcast %141 : vector<8x1xf32> to vector<8x32xf32>
    %143 = arith.subf %135, %142 : vector<8x32xf32>
    %144 = arith.mulf %143, %143 : vector<8x32xf32>
    %cst_57 = arith.constant dense<0.000000e+00> : vector<8xf32>
    %145 = vector.multi_reduction <add>, %144, %cst_57 [1] : vector<8x32xf32> to vector<8xf32>
    %146 = vector.shape_cast %145 : vector<8xf32> to vector<8x1xf32>
    %cst_58 = arith.constant 3.200000e+01 : f32
    %147 = vector.broadcast %cst_58 : f32 to vector<8x1xf32>
    %148 = arith.divf %146, %147 : vector<8x1xf32>
    %cst_59 = arith.constant 9.99999997E-7 : f32
    %149 = vector.broadcast %cst_59 : f32 to vector<8x1xf32>
    %150 = arith.addf %148, %149 : vector<8x1xf32>
    %151 = math.rsqrt %150 : vector<8x1xf32>
    %152 = vector.broadcast %151 : vector<8x1xf32> to vector<8x32xf32>
    %153 = arith.mulf %143, %152 : vector<8x32xf32>
    %154 = vector.broadcast %136 : vector<1x32xf32> to vector<8x32xf32>
    %155 = arith.mulf %153, %154 : vector<8x32xf32>
    %156 = vector.broadcast %137 : vector<1x32xf32> to vector<8x32xf32>
    %157 = arith.addf %155, %156 : vector<8x32xf32>
    %c0_60 = arith.constant 0 : index
    %c0_61 = arith.constant 0 : index
    %c0_62 = arith.constant 0 : index
    %158 = vector.load %arg12[%c0_60, %c0_61, %c0_62] : memref<1x8x32xf32, #tpu.memory_space<vmem>>, vector<1x8x32xf32>
    %159 = vector.shape_cast %158 : vector<1x8x32xf32> to vector<8x32xf32>
    %160 = vector.shape_cast %157 : vector<8x32xf32> to vector<1x8x32xf32>
    tpu.vector_store %arg12[%c0_60, %c0_61, %c0_62], %160 {strides = array<i32>} : memref<1x8x32xf32, #tpu.memory_space<vmem>>, vector<1x8x32xf32>,
    return
  }
  func.func @transform_0(%arg0: i32) -> (i32, i32, i32) {
    %c0_i32 = arith.constant 0 : i32
    %c0_i32_0 = arith.constant 0 : i32
    %c0_i32_1 = arith.constant 0 : i32
    return %arg0, %c0_i32, %c0_i32_0 : i32, i32, i32
  }
  func.func @transform_1(%arg0: i32) -> (i32, i32, i32) {
    %c0_i32 = arith.constant 0 : i32
    %c0_i32_0 = arith.constant 0 : i32
    %c0_i32_1 = arith.constant 0 : i32
    return %arg0, %c0_i32, %c0_i32_0 : i32, i32, i32
  }
  func.func @transform_2(%arg0: i32) -> (i32, i32) {
    %c0_i32 = arith.constant 0 : i32
    %c0_i32_0 = arith.constant 0 : i32
    %c0_i32_1 = arith.constant 0 : i32
    return %c0_i32, %c0_i32_0 : i32, i32
  }
  func.func @transform_3(%arg0: i32) -> (i32, i32) {
    %c0_i32 = arith.constant 0 : i32
    %c0_i32_0 = arith.constant 0 : i32
    %c0_i32_1 = arith.constant 0 : i32
    return %c0_i32, %c0_i32_0 : i32, i32
  }
  func.func @transform_4(%arg0: i32) -> (i32, i32) {
    %c0_i32 = arith.constant 0 : i32
    %c0_i32_0 = arith.constant 0 : i32
    %c0_i32_1 = arith.constant 0 : i32
    return %c0_i32, %c0_i32_0 : i32, i32
  }
  func.func @transform_5(%arg0: i32) -> (i32, i32) {
    %c0_i32 = arith.constant 0 : i32
    %c0_i32_0 = arith.constant 0 : i32
    %c0_i32_1 = arith.constant 0 : i32
    return %c0_i32, %c0_i32_0 : i32, i32
  }
  func.func @transform_6(%arg0: i32) -> (i32, i32) {
    %c0_i32 = arith.constant 0 : i32
    %c0_i32_0 = arith.constant 0 : i32
    %c0_i32_1 = arith.constant 0 : i32
    return %c0_i32, %c0_i32_0 : i32, i32
  }
  func.func @transform_7(%arg0: i32) -> (i32, i32) {
    %c0_i32 = arith.constant 0 : i32
    %c0_i32_0 = arith.constant 0 : i32
    %c0_i32_1 = arith.constant 0 : i32
    return %c0_i32, %c0_i32_0 : i32, i32
  }
  func.func @transform_8(%arg0: i32) -> (i32, i32) {
    %c0_i32 = arith.constant 0 : i32
    %c0_i32_0 = arith.constant 0 : i32
    %c0_i32_1 = arith.constant 0 : i32
    return %c0_i32, %c0_i32_0 : i32, i32
  }
  func.func @transform_9(%arg0: i32) -> (i32, i32) {
    %c0_i32 = arith.constant 0 : i32
    %c0_i32_0 = arith.constant 0 : i32
    %c0_i32_1 = arith.constant 0 : i32
    return %c0_i32, %c0_i32_0 : i32, i32
  }
  func.func @transform_10(%arg0: i32) -> (i32, i32) {
    %c0_i32 = arith.constant 0 : i32
    %c0_i32_0 = arith.constant 0 : i32
    %c0_i32_1 = arith.constant 0 : i32
    return %c0_i32, %c0_i32_0 : i32, i32
  }
  func.func @transform_11(%arg0: i32) -> (i32, i32, i32) {
    %c0_i32 = arith.constant 0 : i32
    %c0_i32_0 = arith.constant 0 : i32
    %c0_i32_1 = arith.constant 0 : i32
    return %arg0, %c0_i32, %c0_i32_0 : i32, i32, i32
  }
}

</mosaic_0001>

<llo_original>
// kernel: tpu_custom_call.1
$region0: #{tpu_custom_call.1}
  #allocation0 [shape = 'u32[]', space=smem, size = 0x4, offset = 0x4, fixed_abs, tag = 'smem constant byte address 0x4 - core index']
  #allocation1 [shape = 'u32[144,128]{1,0:T(1,128)}', space=vmem, size = 0x12000, scoped, tag = 'internal scratch']
  %s0 = inlined_call_operand.hbm [shape: f32[2,8,32], index: 0, kind: input, shape index: {}]
  %s1 = inlined_call_operand.hbm [shape: f32[2,8,8], index: 1, kind: input, shape index: {}]
  %s2 = inlined_call_operand.vmem [shape: f32[32,96], index: 2, kind: input, shape index: {}]
  %s3 = inlined_call_operand.vmem [shape: f32[1,96], index: 3, kind: input, shape index: {}]
  %s4 = inlined_call_operand.vmem [shape: f32[32,32], index: 4, kind: input, shape index: {}]
  %s5 = inlined_call_operand.vmem [shape: f32[1,32], index: 5, kind: input, shape index: {}]
  %s6 = inlined_call_operand.vmem [shape: f32[32,64], index: 6, kind: input, shape index: {}]
  %s7 = inlined_call_operand.vmem [shape: f32[1,64], index: 7, kind: input, shape index: {}]
  %s8 = inlined_call_operand.vmem [shape: f32[64,32], index: 8, kind: input, shape index: {}]
  %s9 = inlined_call_operand.vmem [shape: f32[1,32], index: 9, kind: input, shape index: {}]
  %s10 = inlined_call_operand.vmem [shape: f32[4,32], index: 10, kind: input, shape index: {}]
  %s11 = inlined_call_operand.hbm [shape: f32[2,8,32], index: 11, kind: output, shape index: {}]
  %s12 = sld [smem:[#allocation0]]
  $region85: #{tpu_custom_call.1} parent=0
    _
  %s14 = ssub.s32 1, %s12
  %s15 = scalar_select 0, %s14, %s12
  $region1: #{tpu_custom_call.1} parent=0
    #allocation2 [shape = 'u8[8192]{0}', space=vmem, size = 0x2000, scoped, tag = 'input window, operand 0']
    #allocation3 [shape = 's32[2]{0}', space=sflag, size = 0x8, scoped, tag = 'scoped memory for tpu_custom_call.1']
    #allocation4 [shape = 's32[2]{0}', space=sflag, size = 0x8, scoped, tag = 'scoped memory for tpu_custom_call.1']
    #allocation5 [shape = 'u8[8192]{0}', space=vmem, size = 0x2000, scoped, tag = 'input window, operand 1']
    #allocation6 [shape = 's32[2]{0}', space=sflag, size = 0x8, scoped, tag = 'scoped memory for tpu_custom_call.1']
    #allocation7 [shape = 'u8[8192]{0}', space=vmem, size = 0x2000, scoped, tag = 'output window, operand 0']
    %16 = vsyncpa [#allocation3], 0
    %s17 = scalar_lea.sflag [#allocation3], 1
    %18 = vsyncpa %s17, 0
    %19 = vsyncpa [#allocation6], 0
    %s20 = scalar_lea.sflag [#allocation6], 1
    %21 = vsyncpa %s20, 0
    %22 = vsyncpa [#allocation4], 0
    %s23 = scalar_lea.sflag [#allocation4], 1
    %24 = vsyncpa %s23, 0
    loop: start=0, step=1, limit=4
    $region2: #{tpu_custom_call.1} parent=1 // loop_pre_header
      _
    $region3: #{tpu_custom_call.1} parent=1 // loop_header
      %s26 = sphi 0, %s30
      %p27 = scmp.ge.s32.totalorder %s26, 4
      %s36 = sphi 0, %s38
      %s39 = sphi 0, %s36
      %s40 = sphi 0, %s39
      %s56 = sphi 0, %s40
      %s62 = sphi 0, %s64
      %s65 = sphi 0, %s62
      %s66 = sphi 0, %s65
      %s82 = sphi 0, %s66
      %s86 = sphi 0, %s86
      %s88 = sphi 0, %s86
      %s89 = sphi 0, %s88
      %s103 = sphi 0, %s89
      %s107 = sphi 0, %s107
      %s109 = sphi 0, %s107
      %s110 = sphi 0, %s109
      %s124 = sphi 0, %s110
      %s128 = sphi 0, %s128
      %s130 = sphi 0, %s128
      %s131 = sphi 0, %s130
      %s145 = sphi 0, %s131
      %s149 = sphi 0, %s149
      %s151 = sphi 0, %s149
      %s152 = sphi 0, %s151
      %s166 = sphi 0, %s152
      %s170 = sphi 0, %s170
      %s172 = sphi 0, %s170
      %s173 = sphi 0, %s172
      %s187 = sphi 0, %s173
      %s191 = sphi 0, %s191
      %s193 = sphi 0, %s191
      %s194 = sphi 0, %s193
      %s208 = sphi 0, %s194
      %s212 = sphi 0, %s212
      %s214 = sphi 0, %s212
      %s215 = sphi 0, %s214
      %s229 = sphi 0, %s215
      %s233 = sphi 0, %s233
      %s235 = sphi 0, %s233
      %s236 = sphi 0, %s235
      %s250 = sphi 0, %s236
      %s254 = sphi 0, %s254
      %s256 = sphi 0, %s254
      %s257 = sphi 0, %s256
      %s271 = sphi 0, %s257
      %s277 = sphi 0, %s279
      %s280 = sphi 0, %s277
      %s281 = sphi 0, %s280
      %s297 = sphi 0, %s281
    $region4: #{tpu_custom_call.1} parent=1 // loop_header_branch
      %29 = sbr.rel (%p27) target = $region8
    $region5: #{tpu_custom_call.1} parent=1 // loop_body
      %s31 = ssub.s32 %s26, 1
      %s32 = ssub.s32 %s26, 2
      %s33 = sadd.s32 %s26, 1
      %s34 = ssub.s32 %s26, %s33
      %p35 = scmp.eq.s32.totalorder %s34, 0
      %s37 = sadd.s32 %s36, 1
      %s38 = scalar_select %p35, %s36, %s37
      %p41 = pneg %p35
      %p42 = scmp.eq.s32.totalorder %s26, 1
      %p43 = por %p41, %p42
      %p44 = scmp.ne.s32.totalorder %s36, %s39
      %p45 = scmp.eq.s32.totalorder %s26, 0
      %p46 = por %p44, %p45
      %p47 = scmp.ne.s32.totalorder %s36, %s39
      %p48 = scmp.eq.s32.totalorder %s31, 1
      %p49 = por %p47, %p48
      %p50 = scmp.ne.s32.totalorder %s39, %s40
      %p51 = scmp.eq.s32.totalorder %s31, 0
      %p52 = por %p50, %p51
      %p53 = scmp.ne.s32.totalorder %s39, %s40
      %p54 = scmp.eq.s32.totalorder %s32, 1
      %p55 = por %p53, %p54
      %p57 = scmp.ne.s32.totalorder %s40, %s56
      %p58 = scmp.eq.s32.totalorder %s32, 0
      %p59 = por %p57, %p58
      %s60 = ssub.s32 %s26, %s33
      %p61 = scmp.eq.s32.totalorder %s60, 0
      %s63 = sadd.s32 %s62, 1
      %s64 = scalar_select %p61, %s62, %s63
      %p67 = pneg %p61
      %p68 = scmp.eq.s32.totalorder %s26, 1
      %p69 = por %p67, %p68
      %p70 = scmp.ne.s32.totalorder %s62, %s65
      %p71 = scmp.eq.s32.totalorder %s26, 0
      %p72 = por %p70, %p71
      %p73 = scmp.ne.s32.totalorder %s62, %s65
      %p74 = scmp.eq.s32.totalorder %s31, 1
      %p75 = por %p73, %p74
      %p76 = scmp.ne.s32.totalorder %s65, %s66
      %p77 = scmp.eq.s32.totalorder %s31, 0
      %p78 = por %p76, %p77
      %p79 = scmp.ne.s32.totalorder %s65, %s66
      %p80 = scmp.eq.s32.totalorder %s32, 1
      %p81 = por %p79, %p80
      %p83 = scmp.ne.s32.totalorder %s66, %s82
      %p84 = scmp.eq.s32.totalorder %s32, 0
      %p85 = por %p83, %p84
      %s87 = sadd.s32 %s86, 1
      %p90 = scmp.eq.s32.totalorder %s26, 1
      %p91 = scmp.ne.s32.totalorder %s86, %s88
      %p92 = scmp.eq.s32.totalorder %s26, 0
      %p93 = por %p91, %p92
      %p94 = scmp.ne.s32.totalorder %s86, %s88
      %p95 = scmp.eq.s32.totalorder %s31, 1
      %p96 = por %p94, %p95
      %p97 = scmp.ne.s32.totalorder %s88, %s89
      %p98 = scmp.eq.s32.totalorder %s31, 0
      %p99 = por %p97, %p98
      %p100 = scmp.ne.s32.totalorder %s88, %s89
      %p101 = scmp.eq.s32.totalorder %s32, 1
      %p102 = por %p100, %p101
      %p104 = scmp.ne.s32.totalorder %s89, %s103
      %p105 = scmp.eq.s32.totalorder %s32, 0
      %p106 = por %p104, %p105
      %s108 = sadd.s32 %s107, 1
      %p111 = scmp.eq.s32.totalorder %s26, 1
      %p112 = scmp.ne.s32.totalorder %s107, %s109
      %p113 = scmp.eq.s32.totalorder %s26, 0
      %p114 = por %p112, %p113
      %p115 = scmp.ne.s32.totalorder %s107, %s109
      %p116 = scmp.eq.s32.totalorder %s31, 1
      %p117 = por %p115, %p116
      %p118 = scmp.ne.s32.totalorder %s109, %s110
      %p119 = scmp.eq.s32.totalorder %s31, 0
      %p120 = por %p118, %p119
      %p121 = scmp.ne.s32.totalorder %s109, %s110
      %p122 = scmp.eq.s32.totalorder %s32, 1
      %p123 = por %p121, %p122
      %p125 = scmp.ne.s32.totalorder %s110, %s124
      %p126 = scmp.eq.s32.totalorder %s32, 0
      %p127 = por %p125, %p126
      %s129 = sadd.s32 %s128, 1
      %p132 = scmp.eq.s32.totalorder %s26, 1
      %p133 = scmp.ne.s32.totalorder %s128, %s130
      %p134 = scmp.eq.s32.totalorder %s26, 0
      %p135 = por %p133, %p134
      %p136 = scmp.ne.s32.totalorder %s128, %s130
      %p137 = scmp.eq.s32.totalorder %s31, 1
      %p138 = por %p136, %p137
      %p139 = scmp.ne.s32.totalorder %s130, %s131
      %p140 = scmp.eq.s32.totalorder %s31, 0
      %p141 = por %p139, %p140
      %p142 = scmp.ne.s32.totalorder %s130, %s131
      %p143 = scmp.eq.s32.totalorder %s32, 1
      %p144 = por %p142, %p143
      %p146 = scmp.ne.s32.totalorder %s131, %s145
      %p147 = scmp.eq.s32.totalorder %s32, 0
      %p148 = por %p146, %p147
      %s150 = sadd.s32 %s149, 1
      %p153 = scmp.eq.s32.totalorder %s26, 1
      %p154 = scmp.ne.s32.totalorder %s149, %s151
      %p155 = scmp.eq.s32.totalorder %s26, 0
      %p156 = por %p154, %p155
      %p157 = scmp.ne.s32.totalorder %s149, %s151
      %p158 = scmp.eq.s32.totalorder %s31, 1
      %p159 = por %p157, %p158
      %p160 = scmp.ne.s32.totalorder %s151, %s152
      %p161 = scmp.eq.s32.totalorder %s31, 0
      %p162 = por %p160, %p161
      %p163 = scmp.ne.s32.totalorder %s151, %s152
      %p164 = scmp.eq.s32.totalorder %s32, 1
      %p165 = por %p163, %p164
      %p167 = scmp.ne.s32.totalorder %s152, %s166
      %p168 = scmp.eq.s32.totalorder %s32, 0
      %p169 = por %p167, %p168
      %s171 = sadd.s32 %s170, 1
      %p174 = scmp.eq.s32.totalorder %s26, 1
      %p175 = scmp.ne.s32.totalorder %s170, %s172
      %p176 = scmp.eq.s32.totalorder %s26, 0
      %p177 = por %p175, %p176
      %p178 = scmp.ne.s32.totalorder %s170, %s172
      %p179 = scmp.eq.s32.totalorder %s31, 1
      %p180 = por %p178, %p179
      %p181 = scmp.ne.s32.totalorder %s172, %s173
      %p182 = scmp.eq.s32.totalorder %s31, 0
      %p183 = por %p181, %p182
      %p184 = scmp.ne.s32.totalorder %s172, %s173
      %p185 = scmp.eq.s32.totalorder %s32, 1
      %p186 = por %p184, %p185
      %p188 = scmp.ne.s32.totalorder %s173, %s187
      %p189 = scmp.eq.s32.totalorder %s32, 0
      %p190 = por %p188, %p189
      %s192 = sadd.s32 %s191, 1
      %p195 = scmp.eq.s32.totalorder %s26, 1
      %p196 = scmp.ne.s32.totalorder %s191, %s193
      %p197 = scmp.eq.s32.totalorder %s26, 0
      %p198 = por %p196, %p197
      %p199 = scmp.ne.s32.totalorder %s191, %s193
      %p200 = scmp.eq.s32.totalorder %s31, 1
      %p201 = por %p199, %p200
      %p202 = scmp.ne.s32.totalorder %s193, %s194
      %p203 = scmp.eq.s32.totalorder %s31, 0
      %p204 = por %p202, %p203
      %p205 = scmp.ne.s32.totalorder %s193, %s194
      %p206 = scmp.eq.s32.totalorder %s32, 1
      %p207 = por %p205, %p206
      %p209 = scmp.ne.s32.totalorder %s194, %s208
      %p210 = scmp.eq.s32.totalorder %s32, 0
      %p211 = por %p209, %p210
      %s213 = sadd.s32 %s212, 1
      %p216 = scmp.eq.s32.totalorder %s26, 1
      %p217 = scmp.ne.s32.totalorder %s212, %s214
      %p218 = scmp.eq.s32.totalorder %s26, 0
      %p219 = por %p217, %p218
      %p220 = scmp.ne.s32.totalorder %s212, %s214
      %p221 = scmp.eq.s32.totalorder %s31, 1
      %p222 = por %p220, %p221
      %p223 = scmp.ne.s32.totalorder %s214, %s215
      %p224 = scmp.eq.s32.totalorder %s31, 0
      %p225 = por %p223, %p224
      %p226 = scmp.ne.s32.totalorder %s214, %s215
      %p227 = scmp.eq.s32.totalorder %s32, 1
      %p228 = por %p226, %p227
      %p230 = scmp.ne.s32.totalorder %s215, %s229
      %p231 = scmp.eq.s32.totalorder %s32, 0
      %p232 = por %p230, %p231
      %s234 = sadd.s32 %s233, 1
      %p237 = scmp.eq.s32.totalorder %s26, 1
      %p238 = scmp.ne.s32.totalorder %s233, %s235
      %p239 = scmp.eq.s32.totalorder %s26, 0
      %p240 = por %p238, %p239
      %p241 = scmp.ne.s32.totalorder %s233, %s235
      %p242 = scmp.eq.s32.totalorder %s31, 1
      %p243 = por %p241, %p242
      %p244 = scmp.ne.s32.totalorder %s235, %s236
      %p245 = scmp.eq.s32.totalorder %s31, 0
      %p246 = por %p244, %p245
      %p247 = scmp.ne.s32.totalorder %s235, %s236
      %p248 = scmp.eq.s32.totalorder %s32, 1
      %p249 = por %p247, %p248
      %p251 = scmp.ne.s32.totalorder %s236, %s250
      %p252 = scmp.eq.s32.totalorder %s32, 0
      %p253 = por %p251, %p252
      %s255 = sadd.s32 %s254, 1
      %p258 = scmp.eq.s32.totalorder %s26, 1
      %p259 = scmp.ne.s32.totalorder %s254, %s256
      %p260 = scmp.eq.s32.totalorder %s26, 0
      %p261 = por %p259, %p260
      %p262 = scmp.ne.s32.totalorder %s254, %s256
      %p263 = scmp.eq.s32.totalorder %s31, 1
      %p264 = por %p262, %p263
      %p265 = scmp.ne.s32.totalorder %s256, %s257
      %p266 = scmp.eq.s32.totalorder %s31, 0
      %p267 = por %p265, %p266
      %p268 = scmp.ne.s32.totalorder %s256, %s257
      %p269 = scmp.eq.s32.totalorder %s32, 1
      %p270 = por %p268, %p269
      %p272 = scmp.ne.s32.totalorder %s257, %s271
      %p273 = scmp.eq.s32.totalorder %s32, 0
      %p274 = por %p272, %p273
      %s275 = ssub.s32 %s26, %s33
      %p276 = scmp.eq.s32.totalorder %s275, 0
      %s278 = sadd.s32 %s277, 1
      %s279 = scalar_select %p276, %s277, %s278
      %p282 = pneg %p276
      %p283 = scmp.eq.s32.totalorder %s26, 1
      %p284 = por %p282, %p283
      %p285 = scmp.ne.s32.totalorder %s277, %s280
      %p286 = scmp.eq.s32.totalorder %s26, 0
      %p287 = por %p285, %p286
      %p288 = scmp.ne.s32.totalorder %s277, %s280
      %p289 = scmp.eq.s32.totalorder %s31, 1
      %p290 = por %p288, %p289
      %p291 = scmp.ne.s32.totalorder %s280, %s281
      %p292 = scmp.eq.s32.totalorder %s31, 0
      %p293 = por %p291, %p292
      %p294 = scmp.ne.s32.totalorder %s280, %s281
      %p295 = scmp.eq.s32.totalorder %s32, 1
      %p296 = por %p294, %p295
      %p298 = scmp.ne.s32.totalorder %s281, %s297
      %p299 = scmp.eq.s32.totalorder %s32, 0
      %p300 = por %p298, %p299
      %p301 = scmp.le.s32.totalorder 1, %s26
      %p302 = scmp.lt.s32.totalorder %s26, 3
      %p303 = pnand %p301, %p302
      %p304 = pneg %p303
      // Predicated region
      $region9: #{tpu_custom_call.1} parent=5 // pred_check
        _
      $region10: #{tpu_custom_call.1} parent=5 // pred_check_branch
        %306 = sbr.rel (%p303) target = $region12
      $region11: #{tpu_custom_call.1} parent=5 // pred_region
        %s307 = ssub.s32 %s26, 1
        // Predicated region
        $region13: #{tpu_custom_call.1} parent=11 // pred_check
          %p308 = pneg %p99
        $region14: #{tpu_custom_call.1} parent=11 // pred_check_branch
          %310 = sbr.rel (%p308) target = $region16
        $region15: #{tpu_custom_call.1} parent=11 // pred_region
          _
        $region16: #{tpu_custom_call.1} parent=11 // pred_fallthru
          _
        // Predicated region
        $region17: #{tpu_custom_call.1} parent=11 // pred_check
          %p311 = pneg %p120
        $region18: #{tpu_custom_call.1} parent=11 // pred_check_branch
          %313 = sbr.rel (%p311) target = $region20
        $region19: #{tpu_custom_call.1} parent=11 // pred_region
          _
        $region20: #{tpu_custom_call.1} parent=11 // pred_fallthru
          _
        // Predicated region
        $region21: #{tpu_custom_call.1} parent=11 // pred_check
          %p314 = pneg %p141
        $region22: #{tpu_custom_call.1} parent=11 // pred_check_branch
          %316 = sbr.rel (%p314) target = $region24
        $region23: #{tpu_custom_call.1} parent=11 // pred_region
          _
        $region24: #{tpu_custom_call.1} parent=11 // pred_fallthru
          _
        // Predicated region
        $region25: #{tpu_custom_call.1} parent=11 // pred_check
          %p317 = pneg %p162
        $region26: #{tpu_custom_call.1} parent=11 // pred_check_branch
          %319 = sbr.rel (%p317) target = $region28
        $region27: #{tpu_custom_call.1} parent=11 // pred_region
          _
        $region28: #{tpu_custom_call.1} parent=11 // pred_fallthru
          _
        // Predicated region
        $region29: #{tpu_custom_call.1} parent=11 // pred_check
          %p320 = pneg %p183
        $region30: #{tpu_custom_call.1} parent=11 // pred_check_branch
          %322 = sbr.rel (%p320) target = $region32
        $region31: #{tpu_custom_call.1} parent=11 // pred_region
          _
        $region32: #{tpu_custom_call.1} parent=11 // pred_fallthru
          _
        // Predicated region
        $region33: #{tpu_custom_call.1} parent=11 // pred_check
          %p323 = pneg %p204
        $region34: #{tpu_custom_call.1} parent=11 // pred_check_branch
          %325 = sbr.rel (%p323) target = $region36
        $region35: #{tpu_custom_call.1} parent=11 // pred_region
          _
        $region36: #{tpu_custom_call.1} parent=11 // pred_fallthru
          _
        // Predicated region
        $region37: #{tpu_custom_call.1} parent=11 // pred_check
          %p326 = pneg %p225
        $region38: #{tpu_custom_call.1} parent=11 // pred_check_branch
          %328 = sbr.rel (%p326) target = $region40
        $region39: #{tpu_custom_call.1} parent=11 // pred_region
          _
        $region40: #{tpu_custom_call.1} parent=11 // pred_fallthru
          _
        // Predicated region
        $region41: #{tpu_custom_call.1} parent=11 // pred_check
          %p329 = pneg %p246
        $region42: #{tpu_custom_call.1} parent=11 // pred_check_branch
          %331 = sbr.rel (%p329) target = $region44
        $region43: #{tpu_custom_call.1} parent=11 // pred_region
          _
        $region44: #{tpu_custom_call.1} parent=11 // pred_fallthru
          _
        // Predicated region
        $region45: #{tpu_custom_call.1} parent=11 // pred_check
          %p332 = pneg %p267
        $region46: #{tpu_custom_call.1} parent=11 // pred_check_branch
          %334 = sbr.rel (%p332) target = $region48
        $region47: #{tpu_custom_call.1} parent=11 // pred_region
          _
        $region48: #{tpu_custom_call.1} parent=11 // pred_fallthru
          _
      $region12: #{tpu_custom_call.1} parent=5 // pred_fallthru
        _
      %p335 = scmp.lt.s32.totalorder %s26, 2
      // Predicated region
      $region49: #{tpu_custom_call.1} parent=5 // pred_check
        %p336 = pneg %p335
      $region50: #{tpu_custom_call.1} parent=5 // pred_check_branch
        %338 = sbr.rel (%p336) target = $region52
      $region51: #{tpu_custom_call.1} parent=5 // pred_region
        // Predicated region
        $region53: #{tpu_custom_call.1} parent=51 // pred_check
          %p339 = pneg %p46
        $region54: #{tpu_custom_call.1} parent=51 // pred_check_branch
          %341 = sbr.rel (%p339) target = $region56
        $region55: #{tpu_custom_call.1} parent=51 // pred_region
          %s342 = sand.u32 %s36, 1
          %s343 = scalar_lea.sflag [#allocation3], %s342
          %s344 = sand.u32 %s36, 1
          %s345 = smul.addr %s344, 8
          %s346 = scalar_lea.vmem [#allocation2], %s345
          %s348 = ssub.s32 128, 128
          %349 = vsyncadd %s343, %s348
          %s350 = smul.addr %s26, 128
          %s351 = scalar_lea.hbm %s0, %s350
          %s353 = sshll.u32 %s346, 4
          %s354 = int_to_ptr.vmem [resolvable:$true] %s353
          %356 = dma.hbm_to_vmem [thread:$0]  %s351, 128, %s354, %s343
        $region56: #{tpu_custom_call.1} parent=51 // pred_fallthru
          _
        // Predicated region
        $region57: #{tpu_custom_call.1} parent=51 // pred_check
          %p357 = pneg %p72
        $region58: #{tpu_custom_call.1} parent=51 // pred_check_branch
          %359 = sbr.rel (%p357) target = $region60
        $region59: #{tpu_custom_call.1} parent=51 // pred_region
          %s360 = sand.u32 %s62, 1
          %s361 = scalar_lea.sflag [#allocation6], %s360
          %s362 = sand.u32 %s62, 1
          %s363 = smul.addr %s362, 8
          %s364 = scalar_lea.vmem [#allocation5], %s363
          %s366 = ssub.s32 128, 128
          %367 = vsyncadd %s361, %s366
          %s368 = smul.addr %s26, 128
          %s369 = scalar_lea.hbm %s1, %s368
          %s371 = sshll.u32 %s364, 4
          %s372 = int_to_ptr.vmem [resolvable:$true] %s371
          %374 = dma.hbm_to_vmem [thread:$0]  %s369, 128, %s372, %s361
        $region60: #{tpu_custom_call.1} parent=51 // pred_fallthru
          _
      $region52: #{tpu_custom_call.1} parent=5 // pred_fallthru
        _
      %p375 = scmp.le.s32.totalorder 1, %s26
      %p376 = scmp.lt.s32.totalorder %s26, 3
      %p377 = pnand %p375, %p376
      %p378 = pneg %p377
      // Predicated region
      $region61: #{tpu_custom_call.1} parent=5 // pred_check
        _
      $region62: #{tpu_custom_call.1} parent=5 // pred_check_branch
        %380 = sbr.rel (%p377) target = $region64
      $region63: #{tpu_custom_call.1} parent=5 // pred_region
        %s381 = ssub.s32 %s26, 1
        %s382 = sand.u32 %s39, 1
        %s383 = scalar_lea.sflag [#allocation3], %s382
        %s384 = sand.u32 %s39, 1
        %s385 = smul.addr %s384, 8
        %s386 = scalar_lea.vmem [#allocation2], %s385
        // Predicated region
        $region65: #{tpu_custom_call.1} parent=63 // pred_check
          %p387 = pneg %p52
        $region66: #{tpu_custom_call.1} parent=63 // pred_check_branch
          %389 = sbr.rel (%p387) target = $region68
        $region67: #{tpu_custom_call.1} parent=63 // pred_region
          %390 = dma.done %s383, 128
        $region68: #{tpu_custom_call.1} parent=63 // pred_fallthru
          _
        %s391 = sand.u32 %s65, 1
        %s392 = scalar_lea.sflag [#allocation6], %s391
        %s393 = sand.u32 %s65, 1
        %s394 = smul.addr %s393, 8
        %s395 = scalar_lea.vmem [#allocation5], %s394
        // Predicated region
        $region69: #{tpu_custom_call.1} parent=63 // pred_check
          %p396 = pneg %p78
        $region70: #{tpu_custom_call.1} parent=63 // pred_check_branch
          %398 = sbr.rel (%p396) target = $region72
        $region71: #{tpu_custom_call.1} parent=63 // pred_region
          %399 = dma.done %s392, 128
        $region72: #{tpu_custom_call.1} parent=63 // pred_fallthru
          _
        %s400 = sand.u32 %s39, 1
        %s401 = scalar_lea.sflag [#allocation3], %s400
        %s402 = sand.u32 %s39, 1
        %s403 = smul.addr %s402, 8
        %s404 = scalar_lea.vmem [#allocation2], %s403
        %p405 = pneg %p52
        %p406 = pneg %p49
        %s407 = sand.u32 %s65, 1
        %s408 = scalar_lea.sflag [#allocation6], %s407
        %s409 = sand.u32 %s65, 1
        %s410 = smul.addr %s409, 8
        %s411 = scalar_lea.vmem [#allocation5], %s410
        %p412 = pneg %p78
        %p413 = pneg %p75
        %p414 = pneg %p99
        %p415 = pneg %p96
        %p416 = pneg %p120
        %p417 = pneg %p117
        %p418 = pneg %p141
        %p419 = pneg %p138
        %p420 = pneg %p162
        %p421 = pneg %p159
        %p422 = pneg %p183
        %p423 = pneg %p180
        %p424 = pneg %p204
        %p425 = pneg %p201
        %p426 = pneg %p225
        %p427 = pneg %p222
        %p428 = pneg %p246
        %p429 = pneg %p243
        %p430 = pneg %p267
        %p431 = pneg %p264
        %p432 = pneg %p293
        %p433 = pneg %p290
        %s434 = sand.u32 %s280, 1
        %s435 = scalar_lea.sflag [#allocation4], %s434
        %s436 = sand.u32 %s280, 1
        %s437 = smul.addr %s436, 8
        %s438 = scalar_lea.vmem [#allocation7], %s437
        %v439 = vld [vmem:[%s386] sm:$0xff]
        %v440 = vld [vmem:[%s395] sm:$0xff]
        %v441 = vld [vmem:[%s10] sm:$0xf]
        %v442 = vld [vmem:[%s2] sm:$0xff]
        %v443 = vld [vmem:[%s2 + $0x8] sm:$0xff]
        %v444 = vld [vmem:[%s2 + $0x10] sm:$0xff]
        %v445 = vld [vmem:[%s2 + $0x18] sm:$0xff]
        %v446 = vld [vmem:[%s3] sm:$0x1]
        %v448 = vlaneseq
        %v449 = vshrl.u32 %v448, 7
        %v450 = vsub.s32 0, %v449
        %v451 = vrot.slane %v446, %v450
        %vm453 = vcmask 261120
        %v455 = vsel %vm453, %v439, 0
        %457 = vmatprep.subr.mxu0 0.0
        %458 = vmatpush1.msra.mxu0 %v442
        %459 = vmatprep.subr.mxu0 0.0
        %460 = vmatpush1.msra.mxu0 %v443
        %461 = vmatprep.subr.mxu0 0.0
        %462 = vmatpush1.msra.mxu0 %v444
        %463 = vmatprep.subr.mxu0 0.0
        %464 = vmatpush1.msra.mxu0 %v445
        %465 = vmatprep.subr.mxu0 0.0
        %466 = vmatpush1.msra.mxu0 0.0
        %467 = vmatprep.subr.mxu0 0.0
        %468 = vmatpush1.msra.mxu0 0.0
        %469 = vmatprep.subr.mxu0 0.0
        %470 = vmatpush1.msra.mxu0 0.0
        %471 = vmatprep.subr.mxu0 0.0
        %472 = vmatpush1.msra.mxu0 0.0
        %473 = vmatprep.subr.mxu0 0.0
        %474 = vmatpush1.msra.mxu0 0.0
        %475 = vmatprep.subr.mxu0 0.0
        %476 = vmatpush1.msra.mxu0 0.0
        %477 = vmatprep.subr.mxu0 0.0
        %478 = vmatpush1.msra.mxu0 0.0
        %479 = vmatprep.subr.mxu0 0.0
        %480 = vmatpush1.msra.mxu0 0.0
        %481 = vmatprep.subr.mxu0 0.0
        %482 = vmatpush1.msra.mxu0 0.0
        %483 = vmatprep.subr.mxu0 0.0
        %484 = vmatpush1.msra.mxu0 0.0
        %485 = vmatprep.subr.mxu0 0.0
        %486 = vmatpush1.msra.mxu0 0.0
        %487 = vmatprep.subr.mxu0 0.0
        %488 = vmatpush1.msra.mxu0 0.0
        %489 = vmatprep.subr.mxu0 0.0
        %490 = vmatpush1.msra.mxu0 0.0
        %491 = vmatprep.subr.mxu0 0.0
        %492 = vmatpush1.msra.mxu0 0.0
        %493 = vmatprep.subr.mxu0 0.0
        %494 = vmatpush1.msra.mxu0 0.0
        %495 = vmatprep.subr.mxu0 0.0
        %496 = vmatpush1.msra.mxu0 0.0
        %497 = vmatprep.subr.mxu0 0.0
        %498 = vmatpush1.msra.mxu0 0.0
        %499 = vmatprep.subr.mxu0 0.0
        %500 = vmatpush1.msra.mxu0 0.0
        %501 = vmatprep.subr.mxu0 0.0
        %502 = vmatpush1.msra.mxu0 0.0
        %503 = vmatprep.subr.mxu0 0.0
        %504 = vmatpush1.msra.mxu0 0.0
        %505 = vmatprep.subr.mxu0 0.0
        %506 = vmatpush1.msra.mxu0 0.0
        %507 = vmatprep.subr.mxu0 0.0
        %508 = vmatpush1.msra.mxu0 0.0
        %509 = vmatprep.subr.mxu0 0.0
        %510 = vmatpush1.msra.mxu0 0.0
        %511 = vmatprep.subr.mxu0 0.0
        %512 = vmatpush1.msra.mxu0 0.0
        %513 = vmatprep.subr.mxu0 0.0
        %514 = vmatpush1.msra.mxu0 0.0
        %515 = vmatprep.subr.mxu0 0.0
        %516 = vmatpush1.msra.mxu0 0.0
        %517 = vmatprep.subr.mxu0 0.0
        %518 = vmatpush1.msra.mxu0 0.0
        %519 = vmatprep.subr.mxu0 0.0
        %520 = vmatpush1.msra.mxu0 0.0
        %521 = vmatprep.mubr.f32.mxu0 0.0
        %522 = vmatmul.mubr.f32.gmra.mrb[0].mxu0 %v455
        %v523 = vpop.f32.mrb[0].mxu0
        %v524 = vadd.f32 %v451, %v523
        %v525 = vpop.f32.mrb[0].mxu0
        %526 = vdwg.mxu0
        %v527 = vld [vmem:[%s4] sm:$0xff]
        %v528 = vld [vmem:[%s4 + $0x8] sm:$0xff]
        %v529 = vld [vmem:[%s4 + $0x10] sm:$0xff]
        %v530 = vld [vmem:[%s4 + $0x18] sm:$0xff]
        %v531 = vld [vmem:[%s5] sm:$0x1]
        %533 = vrot.lane.b32.xlu0 %v524, 96
        %v534 = vpop.permute.xlu0 %533
        %vm535 = vcmask 64512
        %v536 = vsel %vm535, %v524, 0
        %v538 = vsel %vm535, %v534, 0
        %540 = vmatprep.subr.mxu0 0.0
        %541 = vmatpush1.xpose.msra.mxu0 %v538
        %542 = vmatprep.subr.mxu0 0.0
        %543 = vmatpush1.xpose.msra.mxu0 0.0
        %544 = vmatprep.subr.mxu0 0.0
        %545 = vmatpush1.xpose.msra.mxu0 0.0
        %546 = vmatprep.subr.mxu0 0.0
        %547 = vmatpush1.xpose.msra.mxu0 0.0
        %548 = vmatprep.subr.mxu0 0.0
        %549 = vmatpush1.xpose.msra.mxu0 0.0
        %550 = vmatprep.subr.mxu0 0.0
        %551 = vmatpush1.xpose.msra.mxu0 0.0
        %552 = vmatprep.subr.mxu0 0.0
        %553 = vmatpush1.xpose.msra.mxu0 0.0
        %554 = vmatprep.subr.mxu0 0.0
        %555 = vmatpush1.xpose.msra.mxu0 0.0
        %556 = vmatprep.subr.mxu0 0.0
        %557 = vmatpush1.xpose.msra.mxu0 0.0
        %558 = vmatprep.subr.mxu0 0.0
        %559 = vmatpush1.xpose.msra.mxu0 0.0
        %560 = vmatprep.subr.mxu0 0.0
        %561 = vmatpush1.xpose.msra.mxu0 0.0
        %562 = vmatprep.subr.mxu0 0.0
        %563 = vmatpush1.xpose.msra.mxu0 0.0
        %564 = vmatprep.subr.mxu0 0.0
        %565 = vmatpush1.xpose.msra.mxu0 0.0
        %566 = vmatprep.subr.mxu0 0.0
        %567 = vmatpush1.xpose.msra.mxu0 0.0
        %568 = vmatprep.subr.mxu0 0.0
        %569 = vmatpush1.xpose.msra.mxu0 0.0
        %570 = vmatprep.subr.mxu0 0.0
        %571 = vmatpush1.xpose.msra.mxu0 0.0
        %572 = vmatprep.subr.mxu0 0.0
        %573 = vmatpush1.xpose.msra.mxu0 0.0
        %574 = vmatprep.subr.mxu0 0.0
        %575 = vmatpush1.xpose.msra.mxu0 0.0
        %576 = vmatprep.subr.mxu0 0.0
        %577 = vmatpush1.xpose.msra.mxu0 0.0
        %578 = vmatprep.subr.mxu0 0.0
        %579 = vmatpush1.xpose.msra.mxu0 0.0
        %580 = vmatprep.subr.mxu0 0.0
        %581 = vmatpush1.xpose.msra.mxu0 0.0
        %582 = vmatprep.subr.mxu0 0.0
        %583 = vmatpush1.xpose.msra.mxu0 0.0
        %584 = vmatprep.subr.mxu0 0.0
        %585 = vmatpush1.xpose.msra.mxu0 0.0
        %586 = vmatprep.subr.mxu0 0.0
        %587 = vmatpush1.xpose.msra.mxu0 0.0
        %588 = vmatprep.subr.mxu0 0.0
        %589 = vmatpush1.xpose.msra.mxu0 0.0
        %590 = vmatprep.subr.mxu0 0.0
        %591 = vmatpush1.xpose.msra.mxu0 0.0
        %592 = vmatprep.subr.mxu0 0.0
        %593 = vmatpush1.xpose.msra.mxu0 0.0
        %594 = vmatprep.subr.mxu0 0.0
        %595 = vmatpush1.xpose.msra.mxu0 0.0
        %596 = vmatprep.subr.mxu0 0.0
        %597 = vmatpush1.xpose.msra.mxu0 0.0
        %598 = vmatprep.subr.mxu0 0.0
        %599 = vmatpush1.xpose.msra.mxu0 0.0
        %600 = vmatprep.subr.mxu0 0.0
        %601 = vmatpush1.xpose.msra.mxu0 0.0
        %602 = vmatprep.subr.mxu0 0.0
        %603 = vmatpush1.xpose.msra.mxu0 0.0
        %604 = vmatprep.mubr.f32.mxu0 0.0
        %605 = vmatmul.mubr.f32.gmra.mrb[0].mxu0 %v536
        %v606 = vpop.f32.mrb[0].mxu0
        %v607 = vadd.f32 0.0, %v606
        %v608 = vpop.f32.mrb[0].mxu0
        %609 = vdwg.mxu0
        %v610 = vmul.f32 %v607, 0.35355338
        %v611 = vadd.f32 %v610, %v440
        %v612 = vsel %vm535, %v611, -inf
        %613 = vmax.xlane.f32.xlu0 %v612
        %v614 = vpop.xlane.xlu0 %613
        %v615 = vsub.f32 %v611, %v614
        %v616 = vmul.f32 %v615, 1.442695
        %v617 = vpow.pop %v616
        %v618 = vsel %vm535, %v617, 0.0
        %619 = vadd.xlane.f32.xlu0 %v618
        %v620 = vpop.xlane.xlu0 %619
        %v621 = vrcp.pop %v620
        %v622 = vmul.f32 %v617, %v621
        %623 = vrot.lane.b32.xlu0 %v524, 64
        %v624 = vpop.permute.xlu0 %623
        %v627 = vsel %vm535, %v622, 0
        %629 = vmatprep.subr.mxu0 0.0
        %630 = vmatpush1.msra.mxu0 %v624
        %631 = vmatprep.subr.mxu0 0.0
        %632 = vmatpush1.msra.mxu0 0.0
        %633 = vmatprep.subr.mxu0 0.0
        %634 = vmatpush1.msra.mxu0 0.0
        %635 = vmatprep.subr.mxu0 0.0
        %636 = vmatpush1.msra.mxu0 0.0
        %637 = vmatprep.subr.mxu0 0.0
        %638 = vmatpush1.msra.mxu0 0.0
        %639 = vmatprep.subr.mxu0 0.0
        %640 = vmatpush1.msra.mxu0 0.0
        %641 = vmatprep.subr.mxu0 0.0
        %642 = vmatpush1.msra.mxu0 0.0
        %643 = vmatprep.subr.mxu0 0.0
        %644 = vmatpush1.msra.mxu0 0.0
        %645 = vmatprep.subr.mxu0 0.0
        %646 = vmatpush1.msra.mxu0 0.0
        %647 = vmatprep.subr.mxu0 0.0
        %648 = vmatpush1.msra.mxu0 0.0
        %649 = vmatprep.subr.mxu0 0.0
        %650 = vmatpush1.msra.mxu0 0.0
        %651 = vmatprep.subr.mxu0 0.0
        %652 = vmatpush1.msra.mxu0 0.0
        %653 = vmatprep.subr.mxu0 0.0
        %654 = vmatpush1.msra.mxu0 0.0
        %655 = vmatprep.subr.mxu0 0.0
        %656 = vmatpush1.msra.mxu0 0.0
        %657 = vmatprep.subr.mxu0 0.0
        %658 = vmatpush1.msra.mxu0 0.0
        %659 = vmatprep.subr.mxu0 0.0
        %660 = vmatpush1.msra.mxu0 0.0
        %661 = vmatprep.subr.mxu0 0.0
        %662 = vmatpush1.msra.mxu0 0.0
        %663 = vmatprep.subr.mxu0 0.0
        %664 = vmatpush1.msra.mxu0 0.0
        %665 = vmatprep.subr.mxu0 0.0
        %666 = vmatpush1.msra.mxu0 0.0
        %667 = vmatprep.subr.mxu0 0.0
        %668 = vmatpush1.msra.mxu0 0.0
        %669 = vmatprep.subr.mxu0 0.0
        %670 = vmatpush1.msra.mxu0 0.0
        %671 = vmatprep.subr.mxu0 0.0
        %672 = vmatpush1.msra.mxu0 0.0
        %673 = vmatprep.subr.mxu0 0.0
        %674 = vmatpush1.msra.mxu0 0.0
        %675 = vmatprep.subr.mxu0 0.0
        %676 = vmatpush1.msra.mxu0 0.0
        %677 = vmatprep.subr.mxu0 0.0
        %678 = vmatpush1.msra.mxu0 0.0
        %679 = vmatprep.subr.mxu0 0.0
        %680 = vmatpush1.msra.mxu0 0.0
        %681 = vmatprep.subr.mxu0 0.0
        %682 = vmatpush1.msra.mxu0 0.0
        %683 = vmatprep.subr.mxu0 0.0
        %684 = vmatpush1.msra.mxu0 0.0
        %685 = vmatprep.subr.mxu0 0.0
        %686 = vmatpush1.msra.mxu0 0.0
        %687 = vmatprep.subr.mxu0 0.0
        %688 = vmatpush1.msra.mxu0 0.0
        %689 = vmatprep.subr.mxu0 0.0
        %690 = vmatpush1.msra.mxu0 0.0
        %691 = vmatprep.subr.mxu0 0.0
        %692 = vmatpush1.msra.mxu0 0.0
        %693 = vmatprep.mubr.f32.mxu0 0.0
        %694 = vmatmul.mubr.f32.gmra.mrb[0].mxu0 %v627
        %v695 = vpop.f32.mrb[0].mxu0
        %v696 = vadd.f32 0.0, %v695
        %v697 = vpop.f32.mrb[0].mxu0
        %698 = vdwg.mxu0
        %699 = vrot.lane.b32.xlu0 %v524, 120
        %v700 = vpop.permute.xlu0 %699
        %701 = vrot.lane.b32.xlu0 %v524, 88
        %v702 = vpop.permute.xlu0 %701
        %v703 = vsel %vm535, %v700, 0
        %v705 = vsel %vm535, %v702, 0
        %707 = vmatprep.subr.mxu0 0.0
        %708 = vmatpush1.xpose.msra.mxu0 %v705
        %709 = vmatprep.subr.mxu0 0.0
        %710 = vmatpush1.xpose.msra.mxu0 0.0
        %711 = vmatprep.subr.mxu0 0.0
        %712 = vmatpush1.xpose.msra.mxu0 0.0
        %713 = vmatprep.subr.mxu0 0.0
        %714 = vmatpush1.xpose.msra.mxu0 0.0
        %715 = vmatprep.subr.mxu0 0.0
        %716 = vmatpush1.xpose.msra.mxu0 0.0
        %717 = vmatprep.subr.mxu0 0.0
        %718 = vmatpush1.xpose.msra.mxu0 0.0
        %719 = vmatprep.subr.mxu0 0.0
        %720 = vmatpush1.xpose.msra.mxu0 0.0
        %721 = vmatprep.subr.mxu0 0.0
        %722 = vmatpush1.xpose.msra.mxu0 0.0
        %723 = vmatprep.subr.mxu0 0.0
        %724 = vmatpush1.xpose.msra.mxu0 0.0
        %725 = vmatprep.subr.mxu0 0.0
        %726 = vmatpush1.xpose.msra.mxu0 0.0
        %727 = vmatprep.subr.mxu0 0.0
        %728 = vmatpush1.xpose.msra.mxu0 0.0
        %729 = vmatprep.subr.mxu0 0.0
        %730 = vmatpush1.xpose.msra.mxu0 0.0
        %731 = vmatprep.subr.mxu0 0.0
        %732 = vmatpush1.xpose.msra.mxu0 0.0
        %733 = vmatprep.subr.mxu0 0.0
        %734 = vmatpush1.xpose.msra.mxu0 0.0
        %735 = vmatprep.subr.mxu0 0.0
        %736 = vmatpush1.xpose.msra.mxu0 0.0
        %737 = vmatprep.subr.mxu0 0.0
        %738 = vmatpush1.xpose.msra.mxu0 0.0
        %739 = vmatprep.subr.mxu0 0.0
        %740 = vmatpush1.xpose.msra.mxu0 0.0
        %741 = vmatprep.subr.mxu0 0.0
        %742 = vmatpush1.xpose.msra.mxu0 0.0
        %743 = vmatprep.subr.mxu0 0.0
        %744 = vmatpush1.xpose.msra.mxu0 0.0
        %745 = vmatprep.subr.mxu0 0.0
        %746 = vmatpush1.xpose.msra.mxu0 0.0
        %747 = vmatprep.subr.mxu0 0.0
        %748 = vmatpush1.xpose.msra.mxu0 0.0
        %749 = vmatprep.subr.mxu0 0.0
        %750 = vmatpush1.xpose.msra.mxu0 0.0
        %751 = vmatprep.subr.mxu0 0.0
        %752 = vmatpush1.xpose.msra.mxu0 0.0
        %753 = vmatprep.subr.mxu0 0.0
        %754 = vmatpush1.xpose.msra.mxu0 0.0
        %755 = vmatprep.subr.mxu0 0.0
        %756 = vmatpush1.xpose.msra.mxu0 0.0
        %757 = vmatprep.subr.mxu0 0.0
        %758 = vmatpush1.xpose.msra.mxu0 0.0
        %759 = vmatprep.subr.mxu0 0.0
        %760 = vmatpush1.xpose.msra.mxu0 0.0
        %761 = vmatprep.subr.mxu0 0.0
        %762 = vmatpush1.xpose.msra.mxu0 0.0
        %763 = vmatprep.subr.mxu0 0.0
        %764 = vmatpush1.xpose.msra.mxu0 0.0
        %765 = vmatprep.subr.mxu0 0.0
        %766 = vmatpush1.xpose.msra.mxu0 0.0
        %767 = vmatprep.subr.mxu0 0.0
        %768 = vmatpush1.xpose.msra.mxu0 0.0
        %769 = vmatprep.subr.mxu0 0.0
        %770 = vmatpush1.xpose.msra.mxu0 0.0
        %771 = vmatprep.mubr.f32.mxu0 0.0
        %772 = vmatmul.mubr.f32.gmra.mrb[0].mxu0 %v703
        %v773 = vpop.f32.mrb[0].mxu0
        %v774 = vadd.f32 0.0, %v773
        %v775 = vpop.f32.mrb[0].mxu0
        %776 = vdwg.mxu0
        %v777 = vmul.f32 %v774, 0.35355338
        %v778 = vadd.f32 %v777, %v440
        %v779 = vsel %vm535, %v778, -inf
        %780 = vmax.xlane.f32.xlu0 %v779
        %v781 = vpop.xlane.xlu0 %780
        %v782 = vsub.f32 %v778, %v781
        %v783 = vmul.f32 %v782, 1.442695
        %v784 = vpow.pop %v783
        %v785 = vsel %vm535, %v784, 0.0
        %786 = vadd.xlane.f32.xlu0 %v785
        %v787 = vpop.xlane.xlu0 %786
        %v788 = vrcp.pop %v787
        %v789 = vmul.f32 %v784, %v788
        %790 = vrot.lane.b32.xlu0 %v524, 56
        %v791 = vpop.permute.xlu0 %790
        %v794 = vsel %vm535, %v789, 0
        %796 = vmatprep.subr.mxu0 0.0
        %797 = vmatpush1.msra.mxu0 %v791
        %798 = vmatprep.subr.mxu0 0.0
        %799 = vmatpush1.msra.mxu0 0.0
        %800 = vmatprep.subr.mxu0 0.0
        %801 = vmatpush1.msra.mxu0 0.0
        %802 = vmatprep.subr.mxu0 0.0
        %803 = vmatpush1.msra.mxu0 0.0
        %804 = vmatprep.subr.mxu0 0.0
        %805 = vmatpush1.msra.mxu0 0.0
        %806 = vmatprep.subr.mxu0 0.0
        %807 = vmatpush1.msra.mxu0 0.0
        %808 = vmatprep.subr.mxu0 0.0
        %809 = vmatpush1.msra.mxu0 0.0
        %810 = vmatprep.subr.mxu0 0.0
        %811 = vmatpush1.msra.mxu0 0.0
        %812 = vmatprep.subr.mxu0 0.0
        %813 = vmatpush1.msra.mxu0 0.0
        %814 = vmatprep.subr.mxu0 0.0
        %815 = vmatpush1.msra.mxu0 0.0
        %816 = vmatprep.subr.mxu0 0.0
        %817 = vmatpush1.msra.mxu0 0.0
        %818 = vmatprep.subr.mxu0 0.0
        %819 = vmatpush1.msra.mxu0 0.0
        %820 = vmatprep.subr.mxu0 0.0
        %821 = vmatpush1.msra.mxu0 0.0
        %822 = vmatprep.subr.mxu0 0.0
        %823 = vmatpush1.msra.mxu0 0.0
        %824 = vmatprep.subr.mxu0 0.0
        %825 = vmatpush1.msra.mxu0 0.0
        %826 = vmatprep.subr.mxu0 0.0
        %827 = vmatpush1.msra.mxu0 0.0
        %828 = vmatprep.subr.mxu0 0.0
        %829 = vmatpush1.msra.mxu0 0.0
        %830 = vmatprep.subr.mxu0 0.0
        %831 = vmatpush1.msra.mxu0 0.0
        %832 = vmatprep.subr.mxu0 0.0
        %833 = vmatpush1.msra.mxu0 0.0
        %834 = vmatprep.subr.mxu0 0.0
        %835 = vmatpush1.msra.mxu0 0.0
        %836 = vmatprep.subr.mxu0 0.0
        %837 = vmatpush1.msra.mxu0 0.0
        %838 = vmatprep.subr.mxu0 0.0
        %839 = vmatpush1.msra.mxu0 0.0
        %840 = vmatprep.subr.mxu0 0.0
        %841 = vmatpush1.msra.mxu0 0.0
        %842 = vmatprep.subr.mxu0 0.0
        %843 = vmatpush1.msra.mxu0 0.0
        %844 = vmatprep.subr.mxu0 0.0
        %845 = vmatpush1.msra.mxu0 0.0
        %846 = vmatprep.subr.mxu0 0.0
        %847 = vmatpush1.msra.mxu0 0.0
        %848 = vmatprep.subr.mxu0 0.0
        %849 = vmatpush1.msra.mxu0 0.0
        %850 = vmatprep.subr.mxu0 0.0
        %851 = vmatpush1.msra.mxu0 0.0
        %852 = vmatprep.subr.mxu0 0.0
        %853 = vmatpush1.msra.mxu0 0.0
        %854 = vmatprep.subr.mxu0 0.0
        %855 = vmatpush1.msra.mxu0 0.0
        %856 = vmatprep.subr.mxu0 0.0
        %857 = vmatpush1.msra.mxu0 0.0
        %858 = vmatprep.subr.mxu0 0.0
        %859 = vmatpush1.msra.mxu0 0.0
        %860 = vmatprep.mubr.f32.mxu0 0.0
        %861 = vmatmul.mubr.f32.gmra.mrb[0].mxu0 %v794
        %v862 = vpop.f32.mrb[0].mxu0
        %v863 = vadd.f32 0.0, %v862
        %v864 = vpop.f32.mrb[0].mxu0
        %865 = vdwg.mxu0
        %v867 = vsel %vm535, %v863, 0
        %869 = vmatprep.subr.mxu0 0.0
        %870 = vmatpush1.msra.mxu0 %v528
        %871 = vmatprep.subr.mxu0 0.0
        %872 = vmatpush1.msra.mxu0 0.0
        %873 = vmatprep.subr.mxu0 0.0
        %874 = vmatpush1.msra.mxu0 0.0
        %875 = vmatprep.subr.mxu0 0.0
        %876 = vmatpush1.msra.mxu0 0.0
        %877 = vmatprep.subr.mxu0 0.0
        %878 = vmatpush1.msra.mxu0 0.0
        %879 = vmatprep.subr.mxu0 0.0
        %880 = vmatpush1.msra.mxu0 0.0
        %881 = vmatprep.subr.mxu0 0.0
        %882 = vmatpush1.msra.mxu0 0.0
        %883 = vmatprep.subr.mxu0 0.0
        %884 = vmatpush1.msra.mxu0 0.0
        %885 = vmatprep.subr.mxu0 0.0
        %886 = vmatpush1.msra.mxu0 0.0
        %887 = vmatprep.subr.mxu0 0.0
        %888 = vmatpush1.msra.mxu0 0.0
        %889 = vmatprep.subr.mxu0 0.0
        %890 = vmatpush1.msra.mxu0 0.0
        %891 = vmatprep.subr.mxu0 0.0
        %892 = vmatpush1.msra.mxu0 0.0
        %893 = vmatprep.subr.mxu0 0.0
        %894 = vmatpush1.msra.mxu0 0.0
        %895 = vmatprep.subr.mxu0 0.0
        %896 = vmatpush1.msra.mxu0 0.0
        %897 = vmatprep.subr.mxu0 0.0
        %898 = vmatpush1.msra.mxu0 0.0
        %899 = vmatprep.subr.mxu0 0.0
        %900 = vmatpush1.msra.mxu0 0.0
        %901 = vmatprep.subr.mxu0 0.0
        %902 = vmatpush1.msra.mxu0 0.0
        %903 = vmatprep.subr.mxu0 0.0
        %904 = vmatpush1.msra.mxu0 0.0
        %905 = vmatprep.subr.mxu0 0.0
        %906 = vmatpush1.msra.mxu0 0.0
        %907 = vmatprep.subr.mxu0 0.0
        %908 = vmatpush1.msra.mxu0 0.0
        %909 = vmatprep.subr.mxu0 0.0
        %910 = vmatpush1.msra.mxu0 0.0
        %911 = vmatprep.subr.mxu0 0.0
        %912 = vmatpush1.msra.mxu0 0.0
        %913 = vmatprep.subr.mxu0 0.0
        %914 = vmatpush1.msra.mxu0 0.0
        %915 = vmatprep.subr.mxu0 0.0
        %916 = vmatpush1.msra.mxu0 0.0
        %917 = vmatprep.subr.mxu0 0.0
        %918 = vmatpush1.msra.mxu0 0.0
        %919 = vmatprep.subr.mxu0 0.0
        %920 = vmatpush1.msra.mxu0 0.0
        %921 = vmatprep.subr.mxu0 0.0
        %922 = vmatpush1.msra.mxu0 0.0
        %923 = vmatprep.subr.mxu0 0.0
        %924 = vmatpush1.msra.mxu0 0.0
        %925 = vmatprep.subr.mxu0 0.0
        %926 = vmatpush1.msra.mxu0 0.0
        %927 = vmatprep.subr.mxu0 0.0
        %928 = vmatpush1.msra.mxu0 0.0
        %929 = vmatprep.subr.mxu0 0.0
        %930 = vmatpush1.msra.mxu0 0.0
        %931 = vmatprep.subr.mxu0 0.0
        %932 = vmatpush1.msra.mxu0 0.0
        %933 = vmatprep.mubr.f32.mxu0 0.0
        %934 = vmatmul.mubr.f32.gmra.mrb[0].mxu0 %v867
        %v935 = vpop.f32.mrb[0].mxu0
        %v936 = vadd.f32 0.0, %v935
        %v937 = vpop.f32.mrb[0].mxu0
        %938 = vdwg.mxu0
        %v940 = vsel %vm535, %v696, 0
        %942 = vmatprep.subr.mxu0 0.0
        %943 = vmatpush1.msra.mxu0 %v527
        %944 = vmatprep.subr.mxu0 0.0
        %945 = vmatpush1.msra.mxu0 0.0
        %946 = vmatprep.subr.mxu0 0.0
        %947 = vmatpush1.msra.mxu0 0.0
        %948 = vmatprep.subr.mxu0 0.0
        %949 = vmatpush1.msra.mxu0 0.0
        %950 = vmatprep.subr.mxu0 0.0
        %951 = vmatpush1.msra.mxu0 0.0
        %952 = vmatprep.subr.mxu0 0.0
        %953 = vmatpush1.msra.mxu0 0.0
        %954 = vmatprep.subr.mxu0 0.0
        %955 = vmatpush1.msra.mxu0 0.0
        %956 = vmatprep.subr.mxu0 0.0
        %957 = vmatpush1.msra.mxu0 0.0
        %958 = vmatprep.subr.mxu0 0.0
        %959 = vmatpush1.msra.mxu0 0.0
        %960 = vmatprep.subr.mxu0 0.0
        %961 = vmatpush1.msra.mxu0 0.0
        %962 = vmatprep.subr.mxu0 0.0
        %963 = vmatpush1.msra.mxu0 0.0
        %964 = vmatprep.subr.mxu0 0.0
        %965 = vmatpush1.msra.mxu0 0.0
        %966 = vmatprep.subr.mxu0 0.0
        %967 = vmatpush1.msra.mxu0 0.0
        %968 = vmatprep.subr.mxu0 0.0
        %969 = vmatpush1.msra.mxu0 0.0
        %970 = vmatprep.subr.mxu0 0.0
        %971 = vmatpush1.msra.mxu0 0.0
        %972 = vmatprep.subr.mxu0 0.0
        %973 = vmatpush1.msra.mxu0 0.0
        %974 = vmatprep.subr.mxu0 0.0
        %975 = vmatpush1.msra.mxu0 0.0
        %976 = vmatprep.subr.mxu0 0.0
        %977 = vmatpush1.msra.mxu0 0.0
        %978 = vmatprep.subr.mxu0 0.0
        %979 = vmatpush1.msra.mxu0 0.0
        %980 = vmatprep.subr.mxu0 0.0
        %981 = vmatpush1.msra.mxu0 0.0
        %982 = vmatprep.subr.mxu0 0.0
        %983 = vmatpush1.msra.mxu0 0.0
        %984 = vmatprep.subr.mxu0 0.0
        %985 = vmatpush1.msra.mxu0 0.0
        %986 = vmatprep.subr.mxu0 0.0
        %987 = vmatpush1.msra.mxu0 0.0
        %988 = vmatprep.subr.mxu0 0.0
        %989 = vmatpush1.msra.mxu0 0.0
        %990 = vmatprep.subr.mxu0 0.0
        %991 = vmatpush1.msra.mxu0 0.0
        %992 = vmatprep.subr.mxu0 0.0
        %993 = vmatpush1.msra.mxu0 0.0
        %994 = vmatprep.subr.mxu0 0.0
        %995 = vmatpush1.msra.mxu0 0.0
        %996 = vmatprep.subr.mxu0 0.0
        %997 = vmatpush1.msra.mxu0 0.0
        %998 = vmatprep.subr.mxu0 0.0
        %999 = vmatpush1.msra.mxu0 0.0
        %1000 = vmatprep.subr.mxu0 0.0
        %1001 = vmatpush1.msra.mxu0 0.0
        %1002 = vmatprep.subr.mxu0 0.0
        %1003 = vmatpush1.msra.mxu0 0.0
        %1004 = vmatprep.subr.mxu0 0.0
        %1005 = vmatpush1.msra.mxu0 0.0
        %1006 = vmatprep.mubr.f32.mxu0 0.0
        %1007 = vmatmul.mubr.f32.gmra.mrb[0].mxu0 %v940
        %v1008 = vpop.f32.mrb[0].mxu0
        %v1009 = vadd.f32 %v936, %v1008
        %v1010 = vpop.f32.mrb[0].mxu0
        %1011 = vdwg.mxu0
        %1012 = vrot.lane.b32.xlu0 %v524, 112
        %v1013 = vpop.permute.xlu0 %1012
        %1014 = vrot.lane.b32.xlu0 %v524, 80
        %v1015 = vpop.permute.xlu0 %1014
        %v1016 = vsel %vm535, %v1013, 0
        %v1018 = vsel %vm535, %v1015, 0
        %1020 = vmatprep.subr.mxu0 0.0
        %1021 = vmatpush1.xpose.msra.mxu0 %v1018
        %1022 = vmatprep.subr.mxu0 0.0
        %1023 = vmatpush1.xpose.msra.mxu0 0.0
        %1024 = vmatprep.subr.mxu0 0.0
        %1025 = vmatpush1.xpose.msra.mxu0 0.0
        %1026 = vmatprep.subr.mxu0 0.0
        %1027 = vmatpush1.xpose.msra.mxu0 0.0
        %1028 = vmatprep.subr.mxu0 0.0
        %1029 = vmatpush1.xpose.msra.mxu0 0.0
        %1030 = vmatprep.subr.mxu0 0.0
        %1031 = vmatpush1.xpose.msra.mxu0 0.0
        %1032 = vmatprep.subr.mxu0 0.0
        %1033 = vmatpush1.xpose.msra.mxu0 0.0
        %1034 = vmatprep.subr.mxu0 0.0
        %1035 = vmatpush1.xpose.msra.mxu0 0.0
        %1036 = vmatprep.subr.mxu0 0.0
        %1037 = vmatpush1.xpose.msra.mxu0 0.0
        %1038 = vmatprep.subr.mxu0 0.0
        %1039 = vmatpush1.xpose.msra.mxu0 0.0
        %1040 = vmatprep.subr.mxu0 0.0
        %1041 = vmatpush1.xpose.msra.mxu0 0.0
        %1042 = vmatprep.subr.mxu0 0.0
        %1043 = vmatpush1.xpose.msra.mxu0 0.0
        %1044 = vmatprep.subr.mxu0 0.0
        %1045 = vmatpush1.xpose.msra.mxu0 0.0
        %1046 = vmatprep.subr.mxu0 0.0
        %1047 = vmatpush1.xpose.msra.mxu0 0.0
        %1048 = vmatprep.subr.mxu0 0.0
        %1049 = vmatpush1.xpose.msra.mxu0 0.0
        %1050 = vmatprep.subr.mxu0 0.0
        %1051 = vmatpush1.xpose.msra.mxu0 0.0
        %1052 = vmatprep.subr.mxu0 0.0
        %1053 = vmatpush1.xpose.msra.mxu0 0.0
        %1054 = vmatprep.subr.mxu0 0.0
        %1055 = vmatpush1.xpose.msra.mxu0 0.0
        %1056 = vmatprep.subr.mxu0 0.0
        %1057 = vmatpush1.xpose.msra.mxu0 0.0
        %1058 = vmatprep.subr.mxu0 0.0
        %1059 = vmatpush1.xpose.msra.mxu0 0.0
        %1060 = vmatprep.subr.mxu0 0.0
        %1061 = vmatpush1.xpose.msra.mxu0 0.0
        %1062 = vmatprep.subr.mxu0 0.0
        %1063 = vmatpush1.xpose.msra.mxu0 0.0
        %1064 = vmatprep.subr.mxu0 0.0
        %1065 = vmatpush1.xpose.msra.mxu0 0.0
        %1066 = vmatprep.subr.mxu0 0.0
        %1067 = vmatpush1.xpose.msra.mxu0 0.0
        %1068 = vmatprep.subr.mxu0 0.0
        %1069 = vmatpush1.xpose.msra.mxu0 0.0
        %1070 = vmatprep.subr.mxu0 0.0
        %1071 = vmatpush1.xpose.msra.mxu0 0.0
        %1072 = vmatprep.subr.mxu0 0.0
        %1073 = vmatpush1.xpose.msra.mxu0 0.0
        %1074 = vmatprep.subr.mxu0 0.0
        %1075 = vmatpush1.xpose.msra.mxu0 0.0
        %1076 = vmatprep.subr.mxu0 0.0
        %1077 = vmatpush1.xpose.msra.mxu0 0.0
        %1078 = vmatprep.subr.mxu0 0.0
        %1079 = vmatpush1.xpose.msra.mxu0 0.0
        %1080 = vmatprep.subr.mxu0 0.0
        %1081 = vmatpush1.xpose.msra.mxu0 0.0
        %1082 = vmatprep.subr.mxu0 0.0
        %1083 = vmatpush1.xpose.msra.mxu0 0.0
        %1084 = vmatprep.mubr.f32.mxu0 0.0
        %1085 = vmatmul.mubr.f32.gmra.mrb[0].mxu0 %v1016
        %v1086 = vpop.f32.mrb[0].mxu0
        %v1087 = vadd.f32 0.0, %v1086
        %v1088 = vpop.f32.mrb[0].mxu0
        %1089 = vdwg.mxu0
        %v1090 = vmul.f32 %v1087, 0.35355338
        %v1091 = vadd.f32 %v1090, %v440
        %v1092 = vsel %vm535, %v1091, -inf
        %1093 = vmax.xlane.f32.xlu0 %v1092
        %v1094 = vpop.xlane.xlu0 %1093
        %v1095 = vsub.f32 %v1091, %v1094
        %v1096 = vmul.f32 %v1095, 1.442695
        %v1097 = vpow.pop %v1096
        %v1098 = vsel %vm535, %v1097, 0.0
        %1099 = vadd.xlane.f32.xlu0 %v1098
        %v1100 = vpop.xlane.xlu0 %1099
        %v1101 = vrcp.pop %v1100
        %v1102 = vmul.f32 %v1097, %v1101
        %1103 = vrot.lane.b32.xlu0 %v524, 48
        %v1104 = vpop.permute.xlu0 %1103
        %v1107 = vsel %vm535, %v1102, 0
        %1109 = vmatprep.subr.mxu0 0.0
        %1110 = vmatpush1.msra.mxu0 %v1104
        %1111 = vmatprep.subr.mxu0 0.0
        %1112 = vmatpush1.msra.mxu0 0.0
        %1113 = vmatprep.subr.mxu0 0.0
        %1114 = vmatpush1.msra.mxu0 0.0
        %1115 = vmatprep.subr.mxu0 0.0
        %1116 = vmatpush1.msra.mxu0 0.0
        %1117 = vmatprep.subr.mxu0 0.0
        %1118 = vmatpush1.msra.mxu0 0.0
        %1119 = vmatprep.subr.mxu0 0.0
        %1120 = vmatpush1.msra.mxu0 0.0
        %1121 = vmatprep.subr.mxu0 0.0
        %1122 = vmatpush1.msra.mxu0 0.0
        %1123 = vmatprep.subr.mxu0 0.0
        %1124 = vmatpush1.msra.mxu0 0.0
        %1125 = vmatprep.subr.mxu0 0.0
        %1126 = vmatpush1.msra.mxu0 0.0
        %1127 = vmatprep.subr.mxu0 0.0
        %1128 = vmatpush1.msra.mxu0 0.0
        %1129 = vmatprep.subr.mxu0 0.0
        %1130 = vmatpush1.msra.mxu0 0.0
        %1131 = vmatprep.subr.mxu0 0.0
        %1132 = vmatpush1.msra.mxu0 0.0
        %1133 = vmatprep.subr.mxu0 0.0
        %1134 = vmatpush1.msra.mxu0 0.0
        %1135 = vmatprep.subr.mxu0 0.0
        %1136 = vmatpush1.msra.mxu0 0.0
        %1137 = vmatprep.subr.mxu0 0.0
        %1138 = vmatpush1.msra.mxu0 0.0
        %1139 = vmatprep.subr.mxu0 0.0
        %1140 = vmatpush1.msra.mxu0 0.0
        %1141 = vmatprep.subr.mxu0 0.0
        %1142 = vmatpush1.msra.mxu0 0.0
        %1143 = vmatprep.subr.mxu0 0.0
        %1144 = vmatpush1.msra.mxu0 0.0
        %1145 = vmatprep.subr.mxu0 0.0
        %1146 = vmatpush1.msra.mxu0 0.0
        %1147 = vmatprep.subr.mxu0 0.0
        %1148 = vmatpush1.msra.mxu0 0.0
        %1149 = vmatprep.subr.mxu0 0.0
        %1150 = vmatpush1.msra.mxu0 0.0
        %1151 = vmatprep.subr.mxu0 0.0
        %1152 = vmatpush1.msra.mxu0 0.0
        %1153 = vmatprep.subr.mxu0 0.0
        %1154 = vmatpush1.msra.mxu0 0.0
        %1155 = vmatprep.subr.mxu0 0.0
        %1156 = vmatpush1.msra.mxu0 0.0
        %1157 = vmatprep.subr.mxu0 0.0
        %1158 = vmatpush1.msra.mxu0 0.0
        %1159 = vmatprep.subr.mxu0 0.0
        %1160 = vmatpush1.msra.mxu0 0.0
        %1161 = vmatprep.subr.mxu0 0.0
        %1162 = vmatpush1.msra.mxu0 0.0
        %1163 = vmatprep.subr.mxu0 0.0
        %1164 = vmatpush1.msra.mxu0 0.0
        %1165 = vmatprep.subr.mxu0 0.0
        %1166 = vmatpush1.msra.mxu0 0.0
        %1167 = vmatprep.subr.mxu0 0.0
        %1168 = vmatpush1.msra.mxu0 0.0
        %1169 = vmatprep.subr.mxu0 0.0
        %1170 = vmatpush1.msra.mxu0 0.0
        %1171 = vmatprep.subr.mxu0 0.0
        %1172 = vmatpush1.msra.mxu0 0.0
        %1173 = vmatprep.mubr.f32.mxu0 0.0
        %1174 = vmatmul.mubr.f32.gmra.mrb[0].mxu0 %v1107
        %v1175 = vpop.f32.mrb[0].mxu0
        %v1176 = vadd.f32 0.0, %v1175
        %v1177 = vpop.f32.mrb[0].mxu0
        %1178 = vdwg.mxu0
        %v1180 = vsel %vm535, %v1176, 0
        %1182 = vmatprep.subr.mxu0 0.0
        %1183 = vmatpush1.msra.mxu0 %v529
        %1184 = vmatprep.subr.mxu0 0.0
        %1185 = vmatpush1.msra.mxu0 0.0
        %1186 = vmatprep.subr.mxu0 0.0
        %1187 = vmatpush1.msra.mxu0 0.0
        %1188 = vmatprep.subr.mxu0 0.0
        %1189 = vmatpush1.msra.mxu0 0.0
        %1190 = vmatprep.subr.mxu0 0.0
        %1191 = vmatpush1.msra.mxu0 0.0
        %1192 = vmatprep.subr.mxu0 0.0
        %1193 = vmatpush1.msra.mxu0 0.0
        %1194 = vmatprep.subr.mxu0 0.0
        %1195 = vmatpush1.msra.mxu0 0.0
        %1196 = vmatprep.subr.mxu0 0.0
        %1197 = vmatpush1.msra.mxu0 0.0
        %1198 = vmatprep.subr.mxu0 0.0
        %1199 = vmatpush1.msra.mxu0 0.0
        %1200 = vmatprep.subr.mxu0 0.0
        %1201 = vmatpush1.msra.mxu0 0.0
        %1202 = vmatprep.subr.mxu0 0.0
        %1203 = vmatpush1.msra.mxu0 0.0
        %1204 = vmatprep.subr.mxu0 0.0
        %1205 = vmatpush1.msra.mxu0 0.0
        %1206 = vmatprep.subr.mxu0 0.0
        %1207 = vmatpush1.msra.mxu0 0.0
        %1208 = vmatprep.subr.mxu0 0.0
        %1209 = vmatpush1.msra.mxu0 0.0
        %1210 = vmatprep.subr.mxu0 0.0
        %1211 = vmatpush1.msra.mxu0 0.0
        %1212 = vmatprep.subr.mxu0 0.0
        %1213 = vmatpush1.msra.mxu0 0.0
        %1214 = vmatprep.subr.mxu0 0.0
        %1215 = vmatpush1.msra.mxu0 0.0
        %1216 = vmatprep.subr.mxu0 0.0
        %1217 = vmatpush1.msra.mxu0 0.0
        %1218 = vmatprep.subr.mxu0 0.0
        %1219 = vmatpush1.msra.mxu0 0.0
        %1220 = vmatprep.subr.mxu0 0.0
        %1221 = vmatpush1.msra.mxu0 0.0
        %1222 = vmatprep.subr.mxu0 0.0
        %1223 = vmatpush1.msra.mxu0 0.0
        %1224 = vmatprep.subr.mxu0 0.0
        %1225 = vmatpush1.msra.mxu0 0.0
        %1226 = vmatprep.subr.mxu0 0.0
        %1227 = vmatpush1.msra.mxu0 0.0
        %1228 = vmatprep.subr.mxu0 0.0
        %1229 = vmatpush1.msra.mxu0 0.0
        %1230 = vmatprep.subr.mxu0 0.0
        %1231 = vmatpush1.msra.mxu0 0.0
        %1232 = vmatprep.subr.mxu0 0.0
        %1233 = vmatpush1.msra.mxu0 0.0
        %1234 = vmatprep.subr.mxu0 0.0
        %1235 = vmatpush1.msra.mxu0 0.0
        %1236 = vmatprep.subr.mxu0 0.0
        %1237 = vmatpush1.msra.mxu0 0.0
        %1238 = vmatprep.subr.mxu0 0.0
        %1239 = vmatpush1.msra.mxu0 0.0
        %1240 = vmatprep.subr.mxu0 0.0
        %1241 = vmatpush1.msra.mxu0 0.0
        %1242 = vmatprep.subr.mxu0 0.0
        %1243 = vmatpush1.msra.mxu0 0.0
        %1244 = vmatprep.subr.mxu0 0.0
        %1245 = vmatpush1.msra.mxu0 0.0
        %1246 = vmatprep.mubr.f32.mxu0 0.0
        %1247 = vmatmul.mubr.f32.gmra.mrb[0].mxu0 %v1180
        %v1248 = vpop.f32.mrb[0].mxu0
        %v1249 = vadd.f32 0.0, %v1248
        %v1250 = vpop.f32.mrb[0].mxu0
        %1251 = vdwg.mxu0
        %v1252 = vadd.f32 %v1009, %v1249
        %1253 = vrot.lane.b32.xlu0 %v524, 104
        %v1254 = vpop.permute.xlu0 %1253
        %1255 = vrot.lane.b32.xlu0 %v524, 72
        %v1256 = vpop.permute.xlu0 %1255
        %v1257 = vsel %vm535, %v1254, 0
        %v1259 = vsel %vm535, %v1256, 0
        %1261 = vmatprep.subr.mxu0 0.0
        %1262 = vmatpush1.xpose.msra.mxu0 %v1259
        %1263 = vmatprep.subr.mxu0 0.0
        %1264 = vmatpush1.xpose.msra.mxu0 0.0
        %1265 = vmatprep.subr.mxu0 0.0
        %1266 = vmatpush1.xpose.msra.mxu0 0.0
        %1267 = vmatprep.subr.mxu0 0.0
        %1268 = vmatpush1.xpose.msra.mxu0 0.0
        %1269 = vmatprep.subr.mxu0 0.0
        %1270 = vmatpush1.xpose.msra.mxu0 0.0
        %1271 = vmatprep.subr.mxu0 0.0
        %1272 = vmatpush1.xpose.msra.mxu0 0.0
        %1273 = vmatprep.subr.mxu0 0.0
        %1274 = vmatpush1.xpose.msra.mxu0 0.0
        %1275 = vmatprep.subr.mxu0 0.0
        %1276 = vmatpush1.xpose.msra.mxu0 0.0
        %1277 = vmatprep.subr.mxu0 0.0
        %1278 = vmatpush1.xpose.msra.mxu0 0.0
        %1279 = vmatprep.subr.mxu0 0.0
        %1280 = vmatpush1.xpose.msra.mxu0 0.0
        %1281 = vmatprep.subr.mxu0 0.0
        %1282 = vmatpush1.xpose.msra.mxu0 0.0
        %1283 = vmatprep.subr.mxu0 0.0
        %1284 = vmatpush1.xpose.msra.mxu0 0.0
        %1285 = vmatprep.subr.mxu0 0.0
        %1286 = vmatpush1.xpose.msra.mxu0 0.0
        %1287 = vmatprep.subr.mxu0 0.0
        %1288 = vmatpush1.xpose.msra.mxu0 0.0
        %1289 = vmatprep.subr.mxu0 0.0
        %1290 = vmatpush1.xpose.msra.mxu0 0.0
        %1291 = vmatprep.subr.mxu0 0.0
        %1292 = vmatpush1.xpose.msra.mxu0 0.0
        %1293 = vmatprep.subr.mxu0 0.0
        %1294 = vmatpush1.xpose.msra.mxu0 0.0
        %1295 = vmatprep.subr.mxu0 0.0
        %1296 = vmatpush1.xpose.msra.mxu0 0.0
        %1297 = vmatprep.subr.mxu0 0.0
        %1298 = vmatpush1.xpose.msra.mxu0 0.0
        %1299 = vmatprep.subr.mxu0 0.0
        %1300 = vmatpush1.xpose.msra.mxu0 0.0
        %1301 = vmatprep.subr.mxu0 0.0
        %1302 = vmatpush1.xpose.msra.mxu0 0.0
        %1303 = vmatprep.subr.mxu0 0.0
        %1304 = vmatpush1.xpose.msra.mxu0 0.0
        %1305 = vmatprep.subr.mxu0 0.0
        %1306 = vmatpush1.xpose.msra.mxu0 0.0
        %1307 = vmatprep.subr.mxu0 0.0
        %1308 = vmatpush1.xpose.msra.mxu0 0.0
        %1309 = vmatprep.subr.mxu0 0.0
        %1310 = vmatpush1.xpose.msra.mxu0 0.0
        %1311 = vmatprep.subr.mxu0 0.0
        %1312 = vmatpush1.xpose.msra.mxu0 0.0
        %1313 = vmatprep.subr.mxu0 0.0
        %1314 = vmatpush1.xpose.msra.mxu0 0.0
        %1315 = vmatprep.subr.mxu0 0.0
        %1316 = vmatpush1.xpose.msra.mxu0 0.0
        %1317 = vmatprep.subr.mxu0 0.0
        %1318 = vmatpush1.xpose.msra.mxu0 0.0
        %1319 = vmatprep.subr.mxu0 0.0
        %1320 = vmatpush1.xpose.msra.mxu0 0.0
        %1321 = vmatprep.subr.mxu0 0.0
        %1322 = vmatpush1.xpose.msra.mxu0 0.0
        %1323 = vmatprep.subr.mxu0 0.0
        %1324 = vmatpush1.xpose.msra.mxu0 0.0
        %1325 = vmatprep.mubr.f32.mxu0 0.0
        %1326 = vmatmul.mubr.f32.gmra.mrb[0].mxu0 %v1257
        %v1327 = vpop.f32.mrb[0].mxu0
        %v1328 = vadd.f32 0.0, %v1327
        %v1329 = vpop.f32.mrb[0].mxu0
        %1330 = vdwg.mxu0
        %v1331 = vmul.f32 %v1328, 0.35355338
        %v1332 = vadd.f32 %v1331, %v440
        %v1333 = vsel %vm535, %v1332, -inf
        %1334 = vmax.xlane.f32.xlu0 %v1333
        %v1335 = vpop.xlane.xlu0 %1334
        %v1336 = vsub.f32 %v1332, %v1335
        %v1337 = vmul.f32 %v1336, 1.442695
        %v1338 = vpow.pop %v1337
        %v1339 = vsel %vm535, %v1338, 0.0
        %1340 = vadd.xlane.f32.xlu0 %v1339
        %v1341 = vpop.xlane.xlu0 %1340
        %v1342 = vrcp.pop %v1341
        %v1343 = vmul.f32 %v1338, %v1342
        %1344 = vrot.lane.b32.xlu0 %v524, 40
        %v1345 = vpop.permute.xlu0 %1344
        %v1348 = vsel %vm535, %v1343, 0
        %1350 = vmatprep.subr.mxu0 0.0
        %1351 = vmatpush1.msra.mxu0 %v1345
        %1352 = vmatprep.subr.mxu0 0.0
        %1353 = vmatpush1.msra.mxu0 0.0
        %1354 = vmatprep.subr.mxu0 0.0
        %1355 = vmatpush1.msra.mxu0 0.0
        %1356 = vmatprep.subr.mxu0 0.0
        %1357 = vmatpush1.msra.mxu0 0.0
        %1358 = vmatprep.subr.mxu0 0.0
        %1359 = vmatpush1.msra.mxu0 0.0
        %1360 = vmatprep.subr.mxu0 0.0
        %1361 = vmatpush1.msra.mxu0 0.0
        %1362 = vmatprep.subr.mxu0 0.0
        %1363 = vmatpush1.msra.mxu0 0.0
        %1364 = vmatprep.subr.mxu0 0.0
        %1365 = vmatpush1.msra.mxu0 0.0
        %1366 = vmatprep.subr.mxu0 0.0
        %1367 = vmatpush1.msra.mxu0 0.0
        %1368 = vmatprep.subr.mxu0 0.0
        %1369 = vmatpush1.msra.mxu0 0.0
        %1370 = vmatprep.subr.mxu0 0.0
        %1371 = vmatpush1.msra.mxu0 0.0
        %1372 = vmatprep.subr.mxu0 0.0
        %1373 = vmatpush1.msra.mxu0 0.0
        %1374 = vmatprep.subr.mxu0 0.0
        %1375 = vmatpush1.msra.mxu0 0.0
        %1376 = vmatprep.subr.mxu0 0.0
        %1377 = vmatpush1.msra.mxu0 0.0
        %1378 = vmatprep.subr.mxu0 0.0
        %1379 = vmatpush1.msra.mxu0 0.0
        %1380 = vmatprep.subr.mxu0 0.0
        %1381 = vmatpush1.msra.mxu0 0.0
        %1382 = vmatprep.subr.mxu0 0.0
        %1383 = vmatpush1.msra.mxu0 0.0
        %1384 = vmatprep.subr.mxu0 0.0
        %1385 = vmatpush1.msra.mxu0 0.0
        %1386 = vmatprep.subr.mxu0 0.0
        %1387 = vmatpush1.msra.mxu0 0.0
        %1388 = vmatprep.subr.mxu0 0.0
        %1389 = vmatpush1.msra.mxu0 0.0
        %1390 = vmatprep.subr.mxu0 0.0
        %1391 = vmatpush1.msra.mxu0 0.0
        %1392 = vmatprep.subr.mxu0 0.0
        %1393 = vmatpush1.msra.mxu0 0.0
        %1394 = vmatprep.subr.mxu0 0.0
        %1395 = vmatpush1.msra.mxu0 0.0
        %1396 = vmatprep.subr.mxu0 0.0
        %1397 = vmatpush1.msra.mxu0 0.0
        %1398 = vmatprep.subr.mxu0 0.0
        %1399 = vmatpush1.msra.mxu0 0.0
        %1400 = vmatprep.subr.mxu0 0.0
        %1401 = vmatpush1.msra.mxu0 0.0
        %1402 = vmatprep.subr.mxu0 0.0
        %1403 = vmatpush1.msra.mxu0 0.0
        %1404 = vmatprep.subr.mxu0 0.0
        %1405 = vmatpush1.msra.mxu0 0.0
        %1406 = vmatprep.subr.mxu0 0.0
        %1407 = vmatpush1.msra.mxu0 0.0
        %1408 = vmatprep.subr.mxu0 0.0
        %1409 = vmatpush1.msra.mxu0 0.0
        %1410 = vmatprep.subr.mxu0 0.0
        %1411 = vmatpush1.msra.mxu0 0.0
        %1412 = vmatprep.subr.mxu0 0.0
        %1413 = vmatpush1.msra.mxu0 0.0
        %1414 = vmatprep.mubr.f32.mxu0 0.0
        %1415 = vmatmul.mubr.f32.gmra.mrb[0].mxu0 %v1348
        %v1416 = vpop.f32.mrb[0].mxu0
        %v1417 = vadd.f32 0.0, %v1416
        %v1418 = vpop.f32.mrb[0].mxu0
        %1419 = vdwg.mxu0
        %v1421 = vsel %vm535, %v1417, 0
        %1423 = vmatprep.subr.mxu0 0.0
        %1424 = vmatpush1.msra.mxu0 %v530
        %1425 = vmatprep.subr.mxu0 0.0
        %1426 = vmatpush1.msra.mxu0 0.0
        %1427 = vmatprep.subr.mxu0 0.0
        %1428 = vmatpush1.msra.mxu0 0.0
        %1429 = vmatprep.subr.mxu0 0.0
        %1430 = vmatpush1.msra.mxu0 0.0
        %1431 = vmatprep.subr.mxu0 0.0
        %1432 = vmatpush1.msra.mxu0 0.0
        %1433 = vmatprep.subr.mxu0 0.0
        %1434 = vmatpush1.msra.mxu0 0.0
        %1435 = vmatprep.subr.mxu0 0.0
        %1436 = vmatpush1.msra.mxu0 0.0
        %1437 = vmatprep.subr.mxu0 0.0
        %1438 = vmatpush1.msra.mxu0 0.0
        %1439 = vmatprep.subr.mxu0 0.0
        %1440 = vmatpush1.msra.mxu0 0.0
        %1441 = vmatprep.subr.mxu0 0.0
        %1442 = vmatpush1.msra.mxu0 0.0
        %1443 = vmatprep.subr.mxu0 0.0
        %1444 = vmatpush1.msra.mxu0 0.0
        %1445 = vmatprep.subr.mxu0 0.0
        %1446 = vmatpush1.msra.mxu0 0.0
        %1447 = vmatprep.subr.mxu0 0.0
        %1448 = vmatpush1.msra.mxu0 0.0
        %1449 = vmatprep.subr.mxu0 0.0
        %1450 = vmatpush1.msra.mxu0 0.0
        %1451 = vmatprep.subr.mxu0 0.0
        %1452 = vmatpush1.msra.mxu0 0.0
        %1453 = vmatprep.subr.mxu0 0.0
        %1454 = vmatpush1.msra.mxu0 0.0
        %1455 = vmatprep.subr.mxu0 0.0
        %1456 = vmatpush1.msra.mxu0 0.0
        %1457 = vmatprep.subr.mxu0 0.0
        %1458 = vmatpush1.msra.mxu0 0.0
        %1459 = vmatprep.subr.mxu0 0.0
        %1460 = vmatpush1.msra.mxu0 0.0
        %1461 = vmatprep.subr.mxu0 0.0
        %1462 = vmatpush1.msra.mxu0 0.0
        %1463 = vmatprep.subr.mxu0 0.0
        %1464 = vmatpush1.msra.mxu0 0.0
        %1465 = vmatprep.subr.mxu0 0.0
        %1466 = vmatpush1.msra.mxu0 0.0
        %1467 = vmatprep.subr.mxu0 0.0
        %1468 = vmatpush1.msra.mxu0 0.0
        %1469 = vmatprep.subr.mxu0 0.0
        %1470 = vmatpush1.msra.mxu0 0.0
        %1471 = vmatprep.subr.mxu0 0.0
        %1472 = vmatpush1.msra.mxu0 0.0
        %1473 = vmatprep.subr.mxu0 0.0
        %1474 = vmatpush1.msra.mxu0 0.0
        %1475 = vmatprep.subr.mxu0 0.0
        %1476 = vmatpush1.msra.mxu0 0.0
        %1477 = vmatprep.subr.mxu0 0.0
        %1478 = vmatpush1.msra.mxu0 0.0
        %1479 = vmatprep.subr.mxu0 0.0
        %1480 = vmatpush1.msra.mxu0 0.0
        %1481 = vmatprep.subr.mxu0 0.0
        %1482 = vmatpush1.msra.mxu0 0.0
        %1483 = vmatprep.subr.mxu0 0.0
        %1484 = vmatpush1.msra.mxu0 0.0
        %1485 = vmatprep.subr.mxu0 0.0
        %1486 = vmatpush1.msra.mxu0 0.0
        %1487 = vmatprep.mubr.f32.mxu0 0.0
        %1488 = vmatmul.mubr.f32.gmra.mrb[0].mxu0 %v1421
        %v1489 = vpop.f32.mrb[0].mxu0
        %v1490 = vadd.f32 0.0, %v1489
        %v1491 = vpop.f32.mrb[0].mxu0
        %1492 = vdwg.mxu0
        %v1493 = vadd.f32 %v1252, %v1490
        %v1495 = vlaneseq
        %v1496 = vshrl.u32 %v1495, 7
        %v1497 = vsub.s32 0, %v1496
        %v1498 = vrot.slane %v531, %v1497
        %v1500 = vadd.f32 %v1493, %v1498
        %v1501 = vadd.f32 %v439, %v1500
        %v1502 = vsel %vm453, %v1501, 0.0
        %1503 = vadd.xlane.f32.xlu0 %v1502
        %v1504 = vpop.xlane.xlu0 %1503
        %v1505 = vrcp.pop 32.0
        %v1506 = vmul.f32 %v1504, %v1505
        %v1507 = vsub.f32 %v1501, %v1506
        %v1508 = vmul.f32 %v1507, %v1507
        %v1509 = vsel %vm453, %v1508, 0.0
        %1510 = vadd.xlane.f32.xlu0 %v1509
        %v1511 = vpop.xlane.xlu0 %1510
        %v1512 = vmul.f32 %v1511, %v1505
        %v1513 = vadd.f32 %v1512, 1e-06
        %v1514 = vrsqrt.pop %v1513
        %v1515 = vmul.f32 %v1507, %v1514
        %v1516 = vlaneseq
        %v1517 = vshrl.u32 %v1516, 7
        %v1518 = vsub.s32 0, %v1517
        %v1519 = vrot.slane %v441, %v1518
        %v1520 = vmul.f32 %v1515, %v1519
        %v1521 = vlaneseq
        %v1522 = vshrl.u32 %v1521, 7
        %v1523 = vsub.s32 1, %v1522
        %v1524 = vrot.slane %v441, %v1523
        %v1525 = vadd.f32 %v1520, %v1524
        %v1526 = vld [vmem:[%s6] sm:$0xff]
        %v1527 = vld [vmem:[%s6 + $0x8] sm:$0xff]
        %v1528 = vld [vmem:[%s6 + $0x10] sm:$0xff]
        %v1529 = vld [vmem:[%s6 + $0x18] sm:$0xff]
        %v1530 = vld [vmem:[%s7] sm:$0x1]
        %v1532 = vlaneseq
        %v1533 = vshrl.u32 %v1532, 7
        %v1534 = vsub.s32 0, %v1533
        %v1535 = vrot.slane %v1530, %v1534
        %v1538 = vsel %vm453, %v1525, 0
        %1540 = vmatprep.subr.mxu0 0.0
        %1541 = vmatpush1.msra.mxu0 %v1526
        %1542 = vmatprep.subr.mxu0 0.0
        %1543 = vmatpush1.msra.mxu0 %v1527
        %1544 = vmatprep.subr.mxu0 0.0
        %1545 = vmatpush1.msra.mxu0 %v1528
        %1546 = vmatprep.subr.mxu0 0.0
        %1547 = vmatpush1.msra.mxu0 %v1529
        %1548 = vmatprep.subr.mxu0 0.0
        %1549 = vmatpush1.msra.mxu0 0.0
        %1550 = vmatprep.subr.mxu0 0.0
        %1551 = vmatpush1.msra.mxu0 0.0
        %1552 = vmatprep.subr.mxu0 0.0
        %1553 = vmatpush1.msra.mxu0 0.0
        %1554 = vmatprep.subr.mxu0 0.0
        %1555 = vmatpush1.msra.mxu0 0.0
        %1556 = vmatprep.subr.mxu0 0.0
        %1557 = vmatpush1.msra.mxu0 0.0
        %1558 = vmatprep.subr.mxu0 0.0
        %1559 = vmatpush1.msra.mxu0 0.0
        %1560 = vmatprep.subr.mxu0 0.0
        %1561 = vmatpush1.msra.mxu0 0.0
        %1562 = vmatprep.subr.mxu0 0.0
        %1563 = vmatpush1.msra.mxu0 0.0
        %1564 = vmatprep.subr.mxu0 0.0
        %1565 = vmatpush1.msra.mxu0 0.0
        %1566 = vmatprep.subr.mxu0 0.0
        %1567 = vmatpush1.msra.mxu0 0.0
        %1568 = vmatprep.subr.mxu0 0.0
        %1569 = vmatpush1.msra.mxu0 0.0
        %1570 = vmatprep.subr.mxu0 0.0
        %1571 = vmatpush1.msra.mxu0 0.0
        %1572 = vmatprep.subr.mxu0 0.0
        %1573 = vmatpush1.msra.mxu0 0.0
        %1574 = vmatprep.subr.mxu0 0.0
        %1575 = vmatpush1.msra.mxu0 0.0
        %1576 = vmatprep.subr.mxu0 0.0
        %1577 = vmatpush1.msra.mxu0 0.0
        %1578 = vmatprep.subr.mxu0 0.0
        %1579 = vmatpush1.msra.mxu0 0.0
        %1580 = vmatprep.subr.mxu0 0.0
        %1581 = vmatpush1.msra.mxu0 0.0
        %1582 = vmatprep.subr.mxu0 0.0
        %1583 = vmatpush1.msra.mxu0 0.0
        %1584 = vmatprep.subr.mxu0 0.0
        %1585 = vmatpush1.msra.mxu0 0.0
        %1586 = vmatprep.subr.mxu0 0.0
        %1587 = vmatpush1.msra.mxu0 0.0
        %1588 = vmatprep.subr.mxu0 0.0
        %1589 = vmatpush1.msra.mxu0 0.0
        %1590 = vmatprep.subr.mxu0 0.0
        %1591 = vmatpush1.msra.mxu0 0.0
        %1592 = vmatprep.subr.mxu0 0.0
        %1593 = vmatpush1.msra.mxu0 0.0
        %1594 = vmatprep.subr.mxu0 0.0
        %1595 = vmatpush1.msra.mxu0 0.0
        %1596 = vmatprep.subr.mxu0 0.0
        %1597 = vmatpush1.msra.mxu0 0.0
        %1598 = vmatprep.subr.mxu0 0.0
        %1599 = vmatpush1.msra.mxu0 0.0
        %1600 = vmatprep.subr.mxu0 0.0
        %1601 = vmatpush1.msra.mxu0 0.0
        %1602 = vmatprep.subr.mxu0 0.0
        %1603 = vmatpush1.msra.mxu0 0.0
        %1604 = vmatprep.mubr.f32.mxu0 0.0
        %1605 = vmatmul.mubr.f32.gmra.mrb[0].mxu0 %v1538
        %v1606 = vpop.f32.mrb[0].mxu0
        %v1607 = vadd.f32 %v1535, %v1606
        %v1608 = vpop.f32.mrb[0].mxu0
        %1609 = vdwg.mxu0
        %v1610 = vmax.f32 %v1607, 0.0
        %v1611 = vld [vmem:[%s8] sm:$0xff]
        %v1612 = vld [vmem:[%s8 + $0x8] sm:$0xff]
        %v1613 = vld [vmem:[%s8 + $0x10] sm:$0xff]
        %v1614 = vld [vmem:[%s8 + $0x18] sm:$0xff]
        %v1615 = vld [vmem:[%s8 + $0x20] sm:$0xff]
        %v1616 = vld [vmem:[%s8 + $0x28] sm:$0xff]
        %v1617 = vld [vmem:[%s8 + $0x30] sm:$0xff]
        %v1618 = vld [vmem:[%s8 + $0x38] sm:$0xff]
        %v1619 = vld [vmem:[%s9] sm:$0x1]
        %v1621 = vlaneseq
        %v1622 = vshrl.u32 %v1621, 7
        %v1623 = vsub.s32 0, %v1622
        %v1624 = vrot.slane %v1619, %v1623
        %vm1626 = vcmask 523264
        %v1628 = vsel %vm1626, %v1610, 0
        %1630 = vmatprep.subr.mxu0 0.0
        %1631 = vmatpush1.msra.mxu0 %v1611
        %1632 = vmatprep.subr.mxu0 0.0
        %1633 = vmatpush1.msra.mxu0 %v1612
        %1634 = vmatprep.subr.mxu0 0.0
        %1635 = vmatpush1.msra.mxu0 %v1613
        %1636 = vmatprep.subr.mxu0 0.0
        %1637 = vmatpush1.msra.mxu0 %v1614
        %1638 = vmatprep.subr.mxu0 0.0
        %1639 = vmatpush1.msra.mxu0 %v1615
        %1640 = vmatprep.subr.mxu0 0.0
        %1641 = vmatpush1.msra.mxu0 %v1616
        %1642 = vmatprep.subr.mxu0 0.0
        %1643 = vmatpush1.msra.mxu0 %v1617
        %1644 = vmatprep.subr.mxu0 0.0
        %1645 = vmatpush1.msra.mxu0 %v1618
        %1646 = vmatprep.subr.mxu0 0.0
        %1647 = vmatpush1.msra.mxu0 0.0
        %1648 = vmatprep.subr.mxu0 0.0
        %1649 = vmatpush1.msra.mxu0 0.0
        %1650 = vmatprep.subr.mxu0 0.0
        %1651 = vmatpush1.msra.mxu0 0.0
        %1652 = vmatprep.subr.mxu0 0.0
        %1653 = vmatpush1.msra.mxu0 0.0
        %1654 = vmatprep.subr.mxu0 0.0
        %1655 = vmatpush1.msra.mxu0 0.0
        %1656 = vmatprep.subr.mxu0 0.0
        %1657 = vmatpush1.msra.mxu0 0.0
        %1658 = vmatprep.subr.mxu0 0.0
        %1659 = vmatpush1.msra.mxu0 0.0
        %1660 = vmatprep.subr.mxu0 0.0
        %1661 = vmatpush1.msra.mxu0 0.0
        %1662 = vmatprep.subr.mxu0 0.0
        %1663 = vmatpush1.msra.mxu0 0.0
        %1664 = vmatprep.subr.mxu0 0.0
        %1665 = vmatpush1.msra.mxu0 0.0
        %1666 = vmatprep.subr.mxu0 0.0
        %1667 = vmatpush1.msra.mxu0 0.0
        %1668 = vmatprep.subr.mxu0 0.0
        %1669 = vmatpush1.msra.mxu0 0.0
        %1670 = vmatprep.subr.mxu0 0.0
        %1671 = vmatpush1.msra.mxu0 0.0
        %1672 = vmatprep.subr.mxu0 0.0
        %1673 = vmatpush1.msra.mxu0 0.0
        %1674 = vmatprep.subr.mxu0 0.0
        %1675 = vmatpush1.msra.mxu0 0.0
        %1676 = vmatprep.subr.mxu0 0.0
        %1677 = vmatpush1.msra.mxu0 0.0
        %1678 = vmatprep.subr.mxu0 0.0
        %1679 = vmatpush1.msra.mxu0 0.0
        %1680 = vmatprep.subr.mxu0 0.0
        %1681 = vmatpush1.msra.mxu0 0.0
        %1682 = vmatprep.subr.mxu0 0.0
        %1683 = vmatpush1.msra.mxu0 0.0
        %1684 = vmatprep.subr.mxu0 0.0
        %1685 = vmatpush1.msra.mxu0 0.0
        %1686 = vmatprep.subr.mxu0 0.0
        %1687 = vmatpush1.msra.mxu0 0.0
        %1688 = vmatprep.subr.mxu0 0.0
        %1689 = vmatpush1.msra.mxu0 0.0
        %1690 = vmatprep.subr.mxu0 0.0
        %1691 = vmatpush1.msra.mxu0 0.0
        %1692 = vmatprep.subr.mxu0 0.0
        %1693 = vmatpush1.msra.mxu0 0.0
        %1694 = vmatprep.mubr.f32.mxu0 0.0
        %1695 = vmatmul.mubr.f32.gmra.mrb[0].mxu0 %v1628
        %v1696 = vpop.f32.mrb[0].mxu0
        %v1697 = vadd.f32 %v1624, %v1696
        %v1698 = vpop.f32.mrb[0].mxu0
        %1699 = vdwg.mxu0
        %v1700 = vadd.f32 %v1525, %v1697
        %v1701 = vsel %vm453, %v1700, 0.0
        %1702 = vadd.xlane.f32.xlu0 %v1701
        %v1703 = vpop.xlane.xlu0 %1702
        %v1704 = vmul.f32 %v1703, %v1505
        %v1705 = vsub.f32 %v1700, %v1704
        %v1706 = vmul.f32 %v1705, %v1705
        %v1707 = vsel %vm453, %v1706, 0.0
        %1708 = vadd.xlane.f32.xlu0 %v1707
        %v1709 = vpop.xlane.xlu0 %1708
        %v1710 = vmul.f32 %v1709, %v1505
        %v1711 = vadd.f32 %v1710, 1e-06
        %v1712 = vrsqrt.pop %v1711
        %v1713 = vmul.f32 %v1705, %v1712
        %v1714 = vlaneseq
        %v1715 = vshrl.u32 %v1714, 7
        %v1716 = vsub.s32 2, %v1715
        %v1717 = vrot.slane %v441, %v1716
        %v1718 = vmul.f32 %v1713, %v1717
        %v1719 = vlaneseq
        %v1720 = vshrl.u32 %v1719, 7
        %v1721 = vsub.s32 3, %v1720
        %v1722 = vrot.slane %v441, %v1721
        %v1723 = vadd.f32 %v1718, %v1722
        %1724 = vst.msk [vmem:[%s438] sm:$0xff] %vm453, %v1723
        %s1725 = sand.u32 %s280, 1
        %s1726 = scalar_lea.sflag [#allocation4], %s1725
        %s1727 = sand.u32 %s280, 1
        %s1728 = smul.addr %s1727, 8
        %s1729 = scalar_lea.vmem [#allocation7], %s1728
        // Predicated region
        $region73: #{tpu_custom_call.1} parent=63 // pred_check
          %p1730 = pneg %p290
        $region74: #{tpu_custom_call.1} parent=63 // pred_check_branch
          %1732 = sbr.rel (%p1730) target = $region76
        $region75: #{tpu_custom_call.1} parent=63 // pred_region
          %s1734 = ssub.s32 128, 128
          %1735 = vsyncadd %s1726, %s1734
          %s1736 = smul.addr %s31, 128
          %s1737 = scalar_lea.hbm %s11, %s1736
          %s1739 = sshll.u32 %s1729, 4
          %s1740 = int_to_ptr.vmem [resolvable:$true] %s1739
          %1742 = dma.vmem_to_hbm [thread:$0]  %s1740, 128, %s1737, %s1726
        $region76: #{tpu_custom_call.1} parent=63 // pred_fallthru
          _
      $region64: #{tpu_custom_call.1} parent=5 // pred_fallthru
        _
      %p1743 = scmp.le.s32.totalorder 2, %s26
      // Predicated region
      $region77: #{tpu_custom_call.1} parent=5 // pred_check
        %p1744 = pneg %p1743
      $region78: #{tpu_custom_call.1} parent=5 // pred_check_branch
        %1746 = sbr.rel (%p1744) target = $region80
      $region79: #{tpu_custom_call.1} parent=5 // pred_region
        %s1747 = ssub.s32 %s26, 2
        // Predicated region
        $region81: #{tpu_custom_call.1} parent=79 // pred_check
          %p1748 = pneg %p296
        $region82: #{tpu_custom_call.1} parent=79 // pred_check_branch
          %1750 = sbr.rel (%p1748) target = $region84
        $region83: #{tpu_custom_call.1} parent=79 // pred_region
          %s1751 = sand.u32 %s281, 1
          %s1752 = scalar_lea.sflag [#allocation4], %s1751
          %s1753 = sand.u32 %s281, 1
          %s1754 = smul.addr %s1753, 8
          %s1755 = scalar_lea.vmem [#allocation7], %s1754
          %1756 = dma.done %s1752, 128
        $region84: #{tpu_custom_call.1} parent=79 // pred_fallthru
          _
      $region80: #{tpu_custom_call.1} parent=5 // pred_fallthru
        _
    $region6: #{tpu_custom_call.1} parent=1 // loop_footer
      %s30 = sadd.s32 1, %s26
    $region7: #{tpu_custom_call.1} parent=1 // loop_footer_branch
      %25 = sbr.rel target = $region3
    $region8: #{tpu_custom_call.1} parent=1 // loop_exit
      _
    %1757 = vsyncpa [#allocation3], 1
    %s1758 = scalar_lea.sflag [#allocation3], 1
    %1759 = vsyncpa %s1758, 1
    %1760 = vsyncpa [#allocation6], 1
    %s1761 = scalar_lea.sflag [#allocation6], 1
    %1762 = vsyncpa %s1761, 1
    %1763 = vsyncpa [#allocation4], 1
    %s1764 = scalar_lea.sflag [#allocation4], 1
    %1765 = vsyncpa %s1764, 1

</llo_original>
